<compile_context>
chip_gen: v6e
topology: v6e:2x2x1
jax: 0.10.0
libtpu: 0.0.40
codegen_flags: <defaults>
</compile_context>

<pallas_src>
import jax
import jax.numpy as jnp
from jax.experimental import pallas as pl
from jax.experimental.pallas import tpu as pltpu


# --------------------------------------------------------------------------- #
# Kernel
# --------------------------------------------------------------------------- #
def _mpnn_update_kernel(g_ref, m_ref, bt_ref, h_ref,
                        wih_ref, whh_ref, bih_ref, bhh_ref,
                        out_ref, acc_ref):
    """Grid = (batch blocks, dst blocks, src blocks); src (last) is reduction.

    Block shapes:
      g_ref  : (bb, sb, db)      f32   edge gate            [batch, src, dst]
      m_ref  : (bb, sb, db, ms)  f32   messages             [batch, src, dst, msg]
      bt_ref : (bb, B, sb, db)   int8  edge-type 0/1 masks  [batch, type, src, dst]
      h_ref  : (bb, db, hs)      f32   node hidden state
      wih_ref: (3, ms, hs)  whh_ref: (3, hs, hs)   gate-major GRU weights (r,z,n)
      bih_ref / bhh_ref: (3, 1, hs)
      out_ref: (bb, db, hs)
      acc_ref: (B, bb, db, ms)   f32   per-edge-type aggregated messages
    """
    si = pl.program_id(2)

    @pl.when(si == 0)
    def _init():
        acc_ref[...] = jnp.zeros_like(acc_ref)

    g = g_ref[...]                                            # (bb, sb, db)
    m = m_ref[...]                                            # (bb, sb, db, ms)

    # Fold the edge gate into the tiny per-(src,dst) weight instead of gating
    # the full (sb, db, ms) message block -> no g*m intermediate materialized.
    w_all = bt_ref[...].astype(jnp.float32) * g[:, None]      # (bb, B, sb, db)

    n_et = w_all.shape[1]
    # Per-edge-type masked reduction over source nodes (B is a small static
    # constant -> static unroll).  Each src grid step accumulates its partial
    # sum into the resident VMEM accumulator.
    # TODO(synk): on v7x, express this as a dst-batched MXU contraction
    # (sum_s w[b,e,s,d] * m[b,s,d,c]) once the multi-batch-dim dot_general
    # lowering is verified; on v5e/v6e the kernel is HBM-bound and this VPU
    # form already tracks the roofline.
    for e in range(n_et):
        part = jnp.sum(w_all[:, e][..., None] * m, axis=1)    # (bb, db, ms)
        acc_ref[e] = acc_ref[e] + part

    @pl.when(si == pl.num_programs(2) - 1)
    def _epilogue():
        bb, db, hs = h_ref.shape
        ms = acc_ref.shape[-1]
        n_types = acc_ref.shape[0]
        rows = bb * db

        h2 = h_ref[...].reshape(rows, hs)                     # (rows, hs)
        mb = acc_ref[...].reshape(n_types * rows, ms)         # (B*rows, ms)

        def gate_preacts(x, w_ref, b_ref):
            # One MXU matmul per gate; gate-major weight layout means no
            # slicing inside a 128-lane vreg.
            return [jnp.dot(x, w_ref[k], preferred_element_type=jnp.float32)
                    + b_ref[k] for k in range(3)]

        gx_r, gx_z, gx_n = gate_preacts(mb, wih_ref, bih_ref)  # (B*rows, hs)
        gh_r, gh_z, gh_n = gate_preacts(h2, whh_ref, bhh_ref)  # (rows, hs)

        gx_r = gx_r.reshape(n_types, rows, hs)
        gx_z = gx_z.reshape(n_types, rows, hs)
        gx_n = gx_n.reshape(n_types, rows, hs)

        # GRU gates (PyTorch order r, z, n), batched over edge types.
        r = jax.nn.sigmoid(gx_r + gh_r[None])
        z = jax.nn.sigmoid(gx_z + gh_z[None])
        n = jnp.tanh(gx_n + r * gh_n[None])
        h_new = (1.0 - z) * n + z * h2[None]                  # (B, rows, hs)

        out_ref[...] = jnp.sum(h_new, axis=0).reshape(bb, db, hs)


# --------------------------------------------------------------------------- #
# Block selection / VMEM budgeting
# --------------------------------------------------------------------------- #
def _vmem_budget_bytes():
    try:
        cap = int(pltpu.get_tpu_info().vmem_capacity_bytes)
    except Exception:
        cap = 64 * 2 ** 20          # conservative fallback: v7x per-core VMEM
    return int(0.8 * cap)


def _block_bytes(bb, sb, db, *, ms, hs, n_et):
    f32 = 4
    dbl = 2                                                   # double-buffering
    blocks = dbl * (bb * sb * db * f32                        # g
                    + bb * sb * db * ms * f32                 # m
                    + bb * n_et * sb * db * 1                 # bt (int8)
                    + 2 * bb * db * hs * f32)                 # h + out
    scratch = n_et * bb * db * ms * f32                       # accumulator
    interm = (bb * n_et * sb * db * f32                       # w_all
              + bb * sb * db * ms * f32                       # reduce product temp
              + 8 * n_et * bb * db * hs * f32)                # GRU gate tensors
    weights = dbl * (3 * ms * hs + 3 * hs * hs + 6 * hs) * f32
    return blocks + scratch + interm + weights


def _choose_blocks(batch, n_nodes, ms, hs, n_et, budget,
                   batch_block=None, src_block=None, dst_block=None):
    # dst block is the lane dim of the g/bt blocks: multiple of 128 or full N.
    if dst_block is None:
        dst_block = 128 if (n_nodes > 128 and n_nodes % 128 == 0) else n_nodes
    db = dst_block
    assert n_nodes % db == 0 and (db == n_nodes or db % 128 == 0)

    def src_candidates():
        if src_block is not None:
            yield src_block
            return
        yield n_nodes
        for s in (512, 256, 128, 64, 32, 16, 8):
            if s < n_nodes and n_nodes % s == 0:
                yield s

    def batch_candidates():
        if batch_block is not None:
            yield batch_block
            return
        # Keep >= 2 steps across the parallel grid axes when batch allows it.
        cap = min(4, batch if batch < 2 else batch // 2)
        for c in range(max(cap, 1), 0, -1):
            if batch % c == 0:
                yield c

    for sb in src_candidates():
        for bb in batch_candidates():
            if _block_bytes(bb, sb, db, ms=ms, hs=hs, n_et=n_et) <= budget:
                return bb, sb, db
    fb_bb = batch_block if batch_block is not None else 1
    fb_sb = src_block if src_block is not None else (
        8 if n_nodes % 8 == 0 else n_nodes)
    return fb_bb, fb_sb, db


# --------------------------------------------------------------------------- #
# Wrapper
# --------------------------------------------------------------------------- #
def specialised_update_option3(g, m, b, h, w_ih, w_hh, b_ih, b_hh,
                               *, batch_block=None, src_block=None,
                               dst_block=None):
    batch, n_nodes, _ = g.shape
    ms = m.shape[-1]
    n_et = b.shape[-1]
    hs = h.shape[-1]

    # ---- wrapper-side preprocessing (one fused XLA pass each) --------------
    # Edge-type masks: transpose to (batch, B, N, N), apply the reference's
    # exact `== 1` test and narrow to int8 in a single fused op.
    # TODO(synk): produce b directly in (batch, B, N, N) int8 layout upstream
    # to drop this read+write of b from the per-call path entirely.
    bt = (jnp.transpose(b, (0, 3, 1, 2)) == 1.0).astype(jnp.int8)

    # Gate-major GRU weights so the kernel never slices inside a 128-lane vreg.
    w_ih_g = jnp.transpose(w_ih.reshape(ms, 3, hs), (1, 0, 2))   # (3, ms, hs)
    w_hh_g = jnp.transpose(w_hh.reshape(hs, 3, hs), (1, 0, 2))   # (3, hs, hs)
    b_ih_g = b_ih.reshape(3, 1, hs)
    b_hh_g = b_hh.reshape(3, 1, hs)

    budget = _vmem_budget_bytes()
    bb, sb, db = _choose_blocks(batch, n_nodes, ms, hs, n_et, budget,
                                batch_block, src_block, dst_block)
    assert batch % bb == 0
    assert n_nodes % sb == 0 and (sb == n_nodes or sb % 8 == 0)
    assert n_nodes % db == 0 and (db == n_nodes or db % 128 == 0)

    grid = (batch // bb, n_nodes // db, n_nodes // sb)

    return pl.pallas_call(
        _mpnn_update_kernel,
        out_shape=jax.ShapeDtypeStruct((batch, n_nodes, hs), jnp.float32),
        grid_spec=pltpu.PrefetchScalarGridSpec(
            num_scalar_prefetch=0,
            grid=grid,
            in_specs=[
                pl.BlockSpec((bb, sb, db), lambda bi, di, si: (bi, si, di)),
                pl.BlockSpec((bb, sb, db, ms),
                             lambda bi, di, si: (bi, si, di, 0)),
                pl.BlockSpec((bb, n_et, sb, db),
                             lambda bi, di, si: (bi, 0, si, di)),
                pl.BlockSpec((bb, db, hs), lambda bi, di, si: (bi, di, 0)),
                pl.BlockSpec((3, ms, hs), lambda bi, di, si: (0, 0, 0)),
                pl.BlockSpec((3, hs, hs), lambda bi, di, si: (0, 0, 0)),
                pl.BlockSpec((3, 1, hs), lambda bi, di, si: (0, 0, 0)),
                pl.BlockSpec((3, 1, hs), lambda bi, di, si: (0, 0, 0)),
            ],
            out_specs=pl.BlockSpec((bb, db, hs), lambda bi, di, si: (bi, di, 0)),
            scratch_shapes=[pltpu.VMEM((n_et, bb, db, ms), jnp.float32)]),
        compiler_params=pltpu.CompilerParams(
            dimension_semantics=("parallel", "parallel", "arbitrary"),
            vmem_limit_bytes=budget),
    )(g, m, bt, h, w_ih_g, w_hh_g, b_ih_g, b_hh_g)


# --------------------------------------------------------------------------- #
# Pure-JAX reference mirroring the PyTorch forward (exact `== 1` compare kept)
# --------------------------------------------------------------------------- #
def _reference(g, m, b, h, w_ih, w_hh, b_ih, b_hh):
    hs = h.shape[-1]
    n_et = b.shape[-1]
    out = jnp.zeros_like(h)
    gh = h @ w_hh + b_hh
    for i in range(n_et):
        mask = (b[..., i] == 1.0).astype(jnp.float32)[..., None] * m
        m_b = jnp.sum(g[..., None] * mask, axis=1)                      # (B,N,ms)
        gx = m_b @ w_ih + b_ih
        r = jax.nn.sigmoid(gx[..., :hs] + gh[..., :hs])
        z = jax.nn.sigmoid(gx[..., hs:2 * hs] + gh[..., hs:2 * hs])
        n = jnp.tanh(gx[..., 2 * hs:] + r * gh[..., 2 * hs:])
        out = out + (1.0 - z) * n + z * h
    return out


if __name__ == "__main__":
    batch, n_nodes, ms, hs, num_edge_types = 2, 8, 32, 32, 4

    key = jax.random.PRNGKey(0)
    kg, km, kb, kh, k1, k2, k3, k4 = jax.random.split(key, 8)

    g = jax.random.bernoulli(kg, 0.6, (batch, n_nodes, n_nodes)).astype(jnp.float32)
    m = jax.random.normal(km, (batch, n_nodes, n_nodes, ms), jnp.float32)
    b = jax.random.bernoulli(kb, 0.5, (batch, n_nodes, n_nodes, num_edge_types)
                             ).astype(jnp.float32)
    h = jax.random.normal(kh, (batch, n_nodes, hs), jnp.float32)

    # Deterministic GRU parameters (nn.GRU(ms, hs)), stored transposed.
    scale = 1.0 / jnp.sqrt(jnp.float32(hs))
    w_ih = jax.random.uniform(k1, (ms, 3 * hs), jnp.float32, -scale, scale)
    w_hh = jax.random.uniform(k2, (hs, 3 * hs), jnp.float32, -scale, scale)
    b_ih = jax.random.uniform(k3, (3 * hs,), jnp.float32, -scale, scale)
    b_hh = jax.random.uniform(k4, (3 * hs,), jnp.float32, -scale, scale)

    out = specialised_update_option3(g, m, b, h, w_ih, w_hh, b_ih, b_hh)
    out = jax.block_until_ready(out)

    ref = _reference(g, m, b, h, w_ih, w_hh, b_ih, b_hh)
    assert out.shape == (batch, n_nodes, hs)
    assert jnp.allclose(out, ref, atol=1e-4, rtol=1e-4), "mismatch vs reference"

    print("KERNEL_OK")
</pallas_src>

<mosaic_0001>
module attributes {stable_mosaic.version = 11 : i64} {
  func.func @_mpnn_update_kernel(%arg0: i32, %arg1: i32, %arg2: i32, %arg3: memref<1x8x8xf32, #tpu.memory_space<vmem>>, %arg4: memref<1x8x8x32xf32, #tpu.memory_space<vmem>>, %arg5: memref<1x4x8x8xi8, #tpu.memory_space<vmem>>, %arg6: memref<1x8x32xf32, #tpu.memory_space<vmem>>, %arg7: memref<3x32x32xf32, #tpu.memory_space<vmem>>, %arg8: memref<3x32x32xf32, #tpu.memory_space<vmem>>, %arg9: memref<3x1x32xf32, #tpu.memory_space<vmem>>, %arg10: memref<3x1x32xf32, #tpu.memory_space<vmem>>, %arg11: memref<1x8x32xf32, #tpu.memory_space<vmem>>, %arg12: memref<4x1x8x32xf32, #tpu.memory_space<vmem>>) attributes {dimension_semantics = [#tpu.dimension_semantics<parallel>, #tpu.dimension_semantics<parallel>, #tpu.dimension_semantics<arbitrary>], iteration_bounds = array<i64: 2, 1, 1>, scalar_prefetch = 0 : i64, scratch_operands = 1 : i64, tpu.core_type = #tpu.core_type<tc>, window_params = [{transform_indices = @transform_0, window_bounds = array<i64: 1, 8, 8>}, {transform_indices = @transform_1, window_bounds = array<i64: 1, 8, 8, 32>}, {transform_indices = @transform_2, window_bounds = array<i64: 1, 4, 8, 8>}, {transform_indices = @transform_3, window_bounds = array<i64: 1, 8, 32>}, {pipeline_mode = #tpu.pipeline_mode<synchronous>, transform_indices = @transform_4, window_bounds = array<i64: 3, 32, 32>}, {pipeline_mode = #tpu.pipeline_mode<synchronous>, transform_indices = @transform_5, window_bounds = array<i64: 3, 32, 32>}, {pipeline_mode = #tpu.pipeline_mode<synchronous>, transform_indices = @transform_6, window_bounds = array<i64: 3, 1, 32>}, {pipeline_mode = #tpu.pipeline_mode<synchronous>, transform_indices = @transform_7, window_bounds = array<i64: 3, 1, 32>}, {transform_indices = @transform_8, window_bounds = array<i64: 1, 8, 32>}]} {
    %c0_i32 = arith.constant 0 : i32
    %0 = arith.cmpi eq, %arg2, %c0_i32 : i32
    %1 = arith.extui %0 : i1 to i32
    %c0_i32_0 = arith.constant 0 : i32
    %2 = arith.cmpi ne, %1, %c0_i32_0 : i32
    scf.if %2 {
      %cst_45 = arith.constant 0.000000e+00 : f32
      %61 = vector.broadcast %cst_45 : f32 to vector<4x1x8x32xf32>
      %c0_46 = arith.constant 0 : index
      %c0_47 = arith.constant 0 : index
      %c0_48 = arith.constant 0 : index
      %c0_49 = arith.constant 0 : index
      %62 = vector.load %arg12[%c0_46, %c0_47, %c0_48, %c0_49] : memref<4x1x8x32xf32, #tpu.memory_space<vmem>>, vector<4x1x8x32xf32>
      tpu.vector_store %arg12[%c0_46, %c0_47, %c0_48, %c0_49], %61 {strides = array<i32>} : memref<4x1x8x32xf32, #tpu.memory_space<vmem>>, vector<4x1x8x32xf32>,
    } else {
    }
    %c0 = arith.constant 0 : index
    %c0_1 = arith.constant 0 : index
    %c0_2 = arith.constant 0 : index
    %3 = vector.load %arg3[%c0, %c0_1, %c0_2] : memref<1x8x8xf32, #tpu.memory_space<vmem>>, vector<1x8x8xf32>
    %c0_3 = arith.constant 0 : index
    %c0_4 = arith.constant 0 : index
    %c0_5 = arith.constant 0 : index
    %c0_6 = arith.constant 0 : index
    %4 = vector.load %arg4[%c0_3, %c0_4, %c0_5, %c0_6] : memref<1x8x8x32xf32, #tpu.memory_space<vmem>>, vector<1x8x8x32xf32>
    %c0_7 = arith.constant 0 : index
    %c0_8 = arith.constant 0 : index
    %c0_9 = arith.constant 0 : index
    %c0_10 = arith.constant 0 : index
    %5 = vector.load %arg5[%c0_7, %c0_8, %c0_9, %c0_10] : memref<1x4x8x8xi8, #tpu.memory_space<vmem>>, vector<1x4x8x8xi8>
    %6 = arith.sitofp %5 : vector<1x4x8x8xi8> to vector<1x4x8x8xf32>
    %7 = vector.shape_cast %3 : vector<1x8x8xf32> to vector<1x1x8x8xf32>
    %8 = vector.broadcast %7 : vector<1x1x8x8xf32> to vector<1x4x8x8xf32>
    %9 = arith.mulf %6, %8 : vector<1x4x8x8xf32>
    %10 = vector.extract_strided_slice %9 {offsets = [0, 0, 0, 0], sizes = [1, 1, 8, 8], strides = [1, 1, 1, 1]} : vector<1x4x8x8xf32> to vector<1x1x8x8xf32>
    %11 = vector.shape_cast %10 : vector<1x1x8x8xf32> to vector<1x8x8xf32>
    %12 = vector.shape_cast %11 : vector<1x8x8xf32> to vector<1x8x8x1xf32>
    %13 = vector.broadcast %12 : vector<1x8x8x1xf32> to vector<1x8x8x32xf32>
    %14 = arith.mulf %13, %4 : vector<1x8x8x32xf32>
    %cst = arith.constant dense<0.000000e+00> : vector<1x8x32xf32>
    %15 = vector.multi_reduction <add>, %14, %cst [1] : vector<1x8x8x32xf32> to vector<1x8x32xf32>
    %c0_11 = arith.constant 0 : index
    %c0_12 = arith.constant 0 : index
    %c0_13 = arith.constant 0 : index
    %c0_14 = arith.constant 0 : index
    %16 = vector.load %arg12[%c0_11, %c0_12, %c0_13, %c0_14] : memref<4x1x8x32xf32, #tpu.memory_space<vmem>>, vector<1x1x8x32xf32>
    %17 = vector.shape_cast %16 : vector<1x1x8x32xf32> to vector<1x8x32xf32>
    %18 = arith.addf %17, %15 : vector<1x8x32xf32>
    %c0_15 = arith.constant 0 : index
    %c0_16 = arith.constant 0 : index
    %c0_17 = arith.constant 0 : index
    %c0_18 = arith.constant 0 : index
    %19 = vector.load %arg12[%c0_15, %c0_16, %c0_17, %c0_18] : memref<4x1x8x32xf32, #tpu.memory_space<vmem>>, vector<1x1x8x32xf32>
    %20 = vector.shape_cast %19 : vector<1x1x8x32xf32> to vector<1x8x32xf32>
    %21 = vector.shape_cast %18 : vector<1x8x32xf32> to vector<1x1x8x32xf32>
    tpu.vector_store %arg12[%c0_15, %c0_16, %c0_17, %c0_18], %21 {strides = array<i32>} : memref<4x1x8x32xf32, #tpu.memory_space<vmem>>, vector<1x1x8x32xf32>,
    %22 = vector.extract_strided_slice %9 {offsets = [0, 1, 0, 0], sizes = [1, 1, 8, 8], strides = [1, 1, 1, 1]} : vector<1x4x8x8xf32> to vector<1x1x8x8xf32>
    %23 = vector.shape_cast %22 : vector<1x1x8x8xf32> to vector<1x8x8xf32>
    %24 = vector.shape_cast %23 : vector<1x8x8xf32> to vector<1x8x8x1xf32>
    %25 = vector.broadcast %24 : vector<1x8x8x1xf32> to vector<1x8x8x32xf32>
    %26 = arith.mulf %25, %4 : vector<1x8x8x32xf32>
    %cst_19 = arith.constant dense<0.000000e+00> : vector<1x8x32xf32>
    %27 = vector.multi_reduction <add>, %26, %cst_19 [1] : vector<1x8x8x32xf32> to vector<1x8x32xf32>
    %c1 = arith.constant 1 : index
    %c0_20 = arith.constant 0 : index
    %c0_21 = arith.constant 0 : index
    %c0_22 = arith.constant 0 : index
    %28 = vector.load %arg12[%c1, %c0_20, %c0_21, %c0_22] : memref<4x1x8x32xf32, #tpu.memory_space<vmem>>, vector<1x1x8x32xf32>
    %29 = vector.shape_cast %28 : vector<1x1x8x32xf32> to vector<1x8x32xf32>
    %30 = arith.addf %29, %27 : vector<1x8x32xf32>
    %c1_23 = arith.constant 1 : index
    %c0_24 = arith.constant 0 : index
    %c0_25 = arith.constant 0 : index
    %c0_26 = arith.constant 0 : index
    %31 = vector.load %arg12[%c1_23, %c0_24, %c0_25, %c0_26] : memref<4x1x8x32xf32, #tpu.memory_space<vmem>>, vector<1x1x8x32xf32>
    %32 = vector.shape_cast %31 : vector<1x1x8x32xf32> to vector<1x8x32xf32>
    %33 = vector.shape_cast %30 : vector<1x8x32xf32> to vector<1x1x8x32xf32>
    tpu.vector_store %arg12[%c1_23, %c0_24, %c0_25, %c0_26], %33 {strides = array<i32>} : memref<4x1x8x32xf32, #tpu.memory_space<vmem>>, vector<1x1x8x32xf32>,
    %34 = vector.extract_strided_slice %9 {offsets = [0, 2, 0, 0], sizes = [1, 1, 8, 8], strides = [1, 1, 1, 1]} : vector<1x4x8x8xf32> to vector<1x1x8x8xf32>
    %35 = vector.shape_cast %34 : vector<1x1x8x8xf32> to vector<1x8x8xf32>
    %36 = vector.shape_cast %35 : vector<1x8x8xf32> to vector<1x8x8x1xf32>
    %37 = vector.broadcast %36 : vector<1x8x8x1xf32> to vector<1x8x8x32xf32>
    %38 = arith.mulf %37, %4 : vector<1x8x8x32xf32>
    %cst_27 = arith.constant dense<0.000000e+00> : vector<1x8x32xf32>
    %39 = vector.multi_reduction <add>, %38, %cst_27 [1] : vector<1x8x8x32xf32> to vector<1x8x32xf32>
    %c2 = arith.constant 2 : index
    %c0_28 = arith.constant 0 : index
    %c0_29 = arith.constant 0 : index
    %c0_30 = arith.constant 0 : index
    %40 = vector.load %arg12[%c2, %c0_28, %c0_29, %c0_30] : memref<4x1x8x32xf32, #tpu.memory_space<vmem>>, vector<1x1x8x32xf32>
    %41 = vector.shape_cast %40 : vector<1x1x8x32xf32> to vector<1x8x32xf32>
    %42 = arith.addf %41, %39 : vector<1x8x32xf32>
    %c2_31 = arith.constant 2 : index
    %c0_32 = arith.constant 0 : index
    %c0_33 = arith.constant 0 : index
    %c0_34 = arith.constant 0 : index
    %43 = vector.load %arg12[%c2_31, %c0_32, %c0_33, %c0_34] : memref<4x1x8x32xf32, #tpu.memory_space<vmem>>, vector<1x1x8x32xf32>
    %44 = vector.shape_cast %43 : vector<1x1x8x32xf32> to vector<1x8x32xf32>
    %45 = vector.shape_cast %42 : vector<1x8x32xf32> to vector<1x1x8x32xf32>
    tpu.vector_store %arg12[%c2_31, %c0_32, %c0_33, %c0_34], %45 {strides = array<i32>} : memref<4x1x8x32xf32, #tpu.memory_space<vmem>>, vector<1x1x8x32xf32>,
    %46 = vector.extract_strided_slice %9 {offsets = [0, 3, 0, 0], sizes = [1, 1, 8, 8], strides = [1, 1, 1, 1]} : vector<1x4x8x8xf32> to vector<1x1x8x8xf32>
    %47 = vector.shape_cast %46 : vector<1x1x8x8xf32> to vector<1x8x8xf32>
    %48 = vector.shape_cast %47 : vector<1x8x8xf32> to vector<1x8x8x1xf32>
    %49 = vector.broadcast %48 : vector<1x8x8x1xf32> to vector<1x8x8x32xf32>
    %50 = arith.mulf %49, %4 : vector<1x8x8x32xf32>
    %cst_35 = arith.constant dense<0.000000e+00> : vector<1x8x32xf32>
    %51 = vector.multi_reduction <add>, %50, %cst_35 [1] : vector<1x8x8x32xf32> to vector<1x8x32xf32>
    %c3 = arith.constant 3 : index
    %c0_36 = arith.constant 0 : index
    %c0_37 = arith.constant 0 : index
    %c0_38 = arith.constant 0 : index
    %52 = vector.load %arg12[%c3, %c0_36, %c0_37, %c0_38] : memref<4x1x8x32xf32, #tpu.memory_space<vmem>>, vector<1x1x8x32xf32>
    %53 = vector.shape_cast %52 : vector<1x1x8x32xf32> to vector<1x8x32xf32>
    %54 = arith.addf %53, %51 : vector<1x8x32xf32>
    %c3_39 = arith.constant 3 : index
    %c0_40 = arith.constant 0 : index
    %c0_41 = arith.constant 0 : index
    %c0_42 = arith.constant 0 : index
    %55 = vector.load %arg12[%c3_39, %c0_40, %c0_41, %c0_42] : memref<4x1x8x32xf32, #tpu.memory_space<vmem>>, vector<1x1x8x32xf32>
    %56 = vector.shape_cast %55 : vector<1x1x8x32xf32> to vector<1x8x32xf32>
    %57 = vector.shape_cast %54 : vector<1x8x32xf32> to vector<1x1x8x32xf32>
    tpu.vector_store %arg12[%c3_39, %c0_40, %c0_41, %c0_42], %57 {strides = array<i32>} : memref<4x1x8x32xf32, #tpu.memory_space<vmem>>, vector<1x1x8x32xf32>,
    %c0_i32_43 = arith.constant 0 : i32
    %58 = arith.cmpi eq, %arg2, %c0_i32_43 : i32
    %59 = arith.extui %58 : i1 to i32
    %c0_i32_44 = arith.constant 0 : i32
    %60 = arith.cmpi ne, %59, %c0_i32_44 : i32
    scf.if %60 {
      %c0_45 = arith.constant 0 : index
      %c0_46 = arith.constant 0 : index
      %c0_47 = arith.constant 0 : index
      %61 = vector.load %arg6[%c0_45, %c0_46, %c0_47] : memref<1x8x32xf32, #tpu.memory_space<vmem>>, vector<1x8x32xf32>
      %62 = vector.shape_cast %61 : vector<1x8x32xf32> to vector<8x32xf32>
      %c0_48 = arith.constant 0 : index
      %c0_49 = arith.constant 0 : index
      %c0_50 = arith.constant 0 : index
      %c0_51 = arith.constant 0 : index
      %63 = vector.load %arg12[%c0_48, %c0_49, %c0_50, %c0_51] : memref<4x1x8x32xf32, #tpu.memory_space<vmem>>, vector<4x1x8x32xf32>
      %64 = vector.shape_cast %63 : vector<4x1x8x32xf32> to vector<32x32xf32>
      %c0_52 = arith.constant 0 : index
      %c0_53 = arith.constant 0 : index
      %c0_54 = arith.constant 0 : index
      %65 = vector.load %arg7[%c0_52, %c0_53, %c0_54] : memref<3x32x32xf32, #tpu.memory_space<vmem>>, vector<1x32x32xf32>
      %66 = vector.shape_cast %65 : vector<1x32x32xf32> to vector<32x32xf32>
      %cst_55 = arith.constant dense<0.000000e+00> : vector<32x32xf32>
      %67 = tpu.matmul %64, %66, %cst_55 {dimension_numbers = #tpu.dot_dimension_numbers<[1], [0], [0], [1], [0, 0, 1, 1], [], []>} : vector<32x32xf32>, vector<32x32xf32>, vector<32x32xf32> -> vector<32x32xf32>
      %c0_56 = arith.constant 0 : index
      %c0_57 = arith.constant 0 : index
      %c0_58 = arith.constant 0 : index
      %68 = vector.load %arg9[%c0_56, %c0_57, %c0_58] : memref<3x1x32xf32, #tpu.memory_space<vmem>>, vector<1x1x32xf32>
      %69 = vector.shape_cast %68 : vector<1x1x32xf32> to vector<1x32xf32>
      %70 = vector.broadcast %69 : vector<1x32xf32> to vector<32x32xf32>
      %71 = arith.addf %67, %70 : vector<32x32xf32>
      %c1_59 = arith.constant 1 : index
      %c0_60 = arith.constant 0 : index
      %c0_61 = arith.constant 0 : index
      %72 = vector.load %arg7[%c1_59, %c0_60, %c0_61] : memref<3x32x32xf32, #tpu.memory_space<vmem>>, vector<1x32x32xf32>
      %73 = vector.shape_cast %72 : vector<1x32x32xf32> to vector<32x32xf32>
      %cst_62 = arith.constant dense<0.000000e+00> : vector<32x32xf32>
      %74 = tpu.matmul %64, %73, %cst_62 {dimension_numbers = #tpu.dot_dimension_numbers<[1], [0], [0], [1], [0, 0, 1, 1], [], []>} : vector<32x32xf32>, vector<32x32xf32>, vector<32x32xf32> -> vector<32x32xf32>
      %c1_63 = arith.constant 1 : index
      %c0_64 = arith.constant 0 : index
      %c0_65 = arith.constant 0 : index
      %75 = vector.load %arg9[%c1_63, %c0_64, %c0_65] : memref<3x1x32xf32, #tpu.memory_space<vmem>>, vector<1x1x32xf32>
      %76 = vector.shape_cast %75 : vector<1x1x32xf32> to vector<1x32xf32>
      %77 = vector.broadcast %76 : vector<1x32xf32> to vector<32x32xf32>
      %78 = arith.addf %74, %77 : vector<32x32xf32>
      %c2_66 = arith.constant 2 : index
      %c0_67 = arith.constant 0 : index
      %c0_68 = arith.constant 0 : index
      %79 = vector.load %arg7[%c2_66, %c0_67, %c0_68] : memref<3x32x32xf32, #tpu.memory_space<vmem>>, vector<1x32x32xf32>
      %80 = vector.shape_cast %79 : vector<1x32x32xf32> to vector<32x32xf32>
      %cst_69 = arith.constant dense<0.000000e+00> : vector<32x32xf32>
      %81 = tpu.matmul %64, %80, %cst_69 {dimension_numbers = #tpu.dot_dimension_numbers<[1], [0], [0], [1], [0, 0, 1, 1], [], []>} : vector<32x32xf32>, vector<32x32xf32>, vector<32x32xf32> -> vector<32x32xf32>
      %c2_70 = arith.constant 2 : index
      %c0_71 = arith.constant 0 : index
      %c0_72 = arith.constant 0 : index
      %82 = vector.load %arg9[%c2_70, %c0_71, %c0_72] : memref<3x1x32xf32, #tpu.memory_space<vmem>>, vector<1x1x32xf32>
      %83 = vector.shape_cast %82 : vector<1x1x32xf32> to vector<1x32xf32>
      %84 = vector.broadcast %83 : vector<1x32xf32> to vector<32x32xf32>
      %85 = arith.addf %81, %84 : vector<32x32xf32>
      %c0_73 = arith.constant 0 : index
      %c0_74 = arith.constant 0 : index
      %c0_75 = arith.constant 0 : index
      %86 = vector.load %arg8[%c0_73, %c0_74, %c0_75] : memref<3x32x32xf32, #tpu.memory_space<vmem>>, vector<1x32x32xf32>
      %87 = vector.shape_cast %86 : vector<1x32x32xf32> to vector<32x32xf32>
      %cst_76 = arith.constant dense<0.000000e+00> : vector<8x32xf32>
      %88 = tpu.matmul %62, %87, %cst_76 {dimension_numbers = #tpu.dot_dimension_numbers<[1], [0], [0], [1], [0, 0, 1, 1], [], []>} : vector<8x32xf32>, vector<32x32xf32>, vector<8x32xf32> -> vector<8x32xf32>
      %c0_77 = arith.constant 0 : index
      %c0_78 = arith.constant 0 : index
      %c0_79 = arith.constant 0 : index
      %89 = vector.load %arg10[%c0_77, %c0_78, %c0_79] : memref<3x1x32xf32, #tpu.memory_space<vmem>>, vector<1x1x32xf32>
      %90 = vector.shape_cast %89 : vector<1x1x32xf32> to vector<1x32xf32>
      %91 = vector.broadcast %90 : vector<1x32xf32> to vector<8x32xf32>
      %92 = arith.addf %88, %91 : vector<8x32xf32>
      %c1_80 = arith.constant 1 : index
      %c0_81 = arith.constant 0 : index
      %c0_82 = arith.constant 0 : index
      %93 = vector.load %arg8[%c1_80, %c0_81, %c0_82] : memref<3x32x32xf32, #tpu.memory_space<vmem>>, vector<1x32x32xf32>
      %94 = vector.shape_cast %93 : vector<1x32x32xf32> to vector<32x32xf32>
      %cst_83 = arith.constant dense<0.000000e+00> : vector<8x32xf32>
      %95 = tpu.matmul %62, %94, %cst_83 {dimension_numbers = #tpu.dot_dimension_numbers<[1], [0], [0], [1], [0, 0, 1, 1], [], []>} : vector<8x32xf32>, vector<32x32xf32>, vector<8x32xf32> -> vector<8x32xf32>
      %c1_84 = arith.constant 1 : index
      %c0_85 = arith.constant 0 : index
      %c0_86 = arith.constant 0 : index
      %96 = vector.load %arg10[%c1_84, %c0_85, %c0_86] : memref<3x1x32xf32, #tpu.memory_space<vmem>>, vector<1x1x32xf32>
      %97 = vector.shape_cast %96 : vector<1x1x32xf32> to vector<1x32xf32>
      %98 = vector.broadcast %97 : vector<1x32xf32> to vector<8x32xf32>
      %99 = arith.addf %95, %98 : vector<8x32xf32>
      %c2_87 = arith.constant 2 : index
      %c0_88 = arith.constant 0 : index
      %c0_89 = arith.constant 0 : index
      %100 = vector.load %arg8[%c2_87, %c0_88, %c0_89] : memref<3x32x32xf32, #tpu.memory_space<vmem>>, vector<1x32x32xf32>
      %101 = vector.shape_cast %100 : vector<1x32x32xf32> to vector<32x32xf32>
      %cst_90 = arith.constant dense<0.000000e+00> : vector<8x32xf32>
      %102 = tpu.matmul %62, %101, %cst_90 {dimension_numbers = #tpu.dot_dimension_numbers<[1], [0], [0], [1], [0, 0, 1, 1], [], []>} : vector<8x32xf32>, vector<32x32xf32>, vector<8x32xf32> -> vector<8x32xf32>
      %c2_91 = arith.constant 2 : index
      %c0_92 = arith.constant 0 : index
      %c0_93 = arith.constant 0 : index
      %103 = vector.load %arg10[%c2_91, %c0_92, %c0_93] : memref<3x1x32xf32, #tpu.memory_space<vmem>>, vector<1x1x32xf32>
      %104 = vector.shape_cast %103 : vector<1x1x32xf32> to vector<1x32xf32>
      %105 = vector.broadcast %104 : vector<1x32xf32> to vector<8x32xf32>
      %106 = arith.addf %102, %105 : vector<8x32xf32>
      %107 = vector.shape_cast %71 : vector<32x32xf32> to vector<4x8x32xf32>
      %108 = vector.shape_cast %78 : vector<32x32xf32> to vector<4x8x32xf32>
      %109 = vector.shape_cast %85 : vector<32x32xf32> to vector<4x8x32xf32>
      %110 = vector.shape_cast %92 : vector<8x32xf32> to vector<1x8x32xf32>
      %111 = vector.broadcast %110 : vector<1x8x32xf32> to vector<4x8x32xf32>
      %112 = arith.addf %107, %111 : vector<4x8x32xf32>
      %113 = arith.negf %112 : vector<4x8x32xf32>
      %114 = math.exp %113 : vector<4x8x32xf32>
      %cst_94 = arith.constant 1.000000e+00 : f32
      %115 = vector.broadcast %cst_94 : f32 to vector<4x8x32xf32>
      %116 = arith.addf %115, %114 : vector<4x8x32xf32>
      %117 = arith.divf %115, %116 : vector<4x8x32xf32>
      %118 = vector.shape_cast %99 : vector<8x32xf32> to vector<1x8x32xf32>
      %119 = vector.broadcast %118 : vector<1x8x32xf32> to vector<4x8x32xf32>
      %120 = arith.addf %108, %119 : vector<4x8x32xf32>
      %121 = arith.negf %120 : vector<4x8x32xf32>
      %122 = math.exp %121 : vector<4x8x32xf32>
      %cst_95 = arith.constant 1.000000e+00 : f32
      %123 = vector.broadcast %cst_95 : f32 to vector<4x8x32xf32>
      %124 = arith.addf %123, %122 : vector<4x8x32xf32>
      %125 = arith.divf %123, %124 : vector<4x8x32xf32>
      %126 = vector.shape_cast %106 : vector<8x32xf32> to vector<1x8x32xf32>
      %127 = vector.broadcast %126 : vector<1x8x32xf32> to vector<4x8x32xf32>
      %128 = arith.mulf %117, %127 : vector<4x8x32xf32>
      %129 = arith.addf %109, %128 : vector<4x8x32xf32>
      %130 = math.tanh %129 : vector<4x8x32xf32>
      %cst_96 = arith.constant 1.000000e+00 : f32
      %131 = vector.broadcast %cst_96 : f32 to vector<4x8x32xf32>
      %132 = arith.subf %131, %125 : vector<4x8x32xf32>
      %133 = arith.mulf %132, %130 : vector<4x8x32xf32>
      %134 = vector.shape_cast %62 : vector<8x32xf32> to vector<1x8x32xf32>
      %135 = vector.broadcast %134 : vector<1x8x32xf32> to vector<4x8x32xf32>
      %136 = arith.mulf %125, %135 : vector<4x8x32xf32>
      %137 = arith.addf %133, %136 : vector<4x8x32xf32>
      %cst_97 = arith.constant dense<0.000000e+00> : vector<8x32xf32>
      %138 = vector.multi_reduction <add>, %137, %cst_97 [0] : vector<4x8x32xf32> to vector<8x32xf32>
      %139 = vector.shape_cast %138 : vector<8x32xf32> to vector<1x8x32xf32>
      %c0_98 = arith.constant 0 : index
      %c0_99 = arith.constant 0 : index
      %c0_100 = arith.constant 0 : index
      %140 = vector.load %arg11[%c0_98, %c0_99, %c0_100] : memref<1x8x32xf32, #tpu.memory_space<vmem>>, vector<1x8x32xf32>
      tpu.vector_store %arg11[%c0_98, %c0_99, %c0_100], %139 {strides = array<i32>} : memref<1x8x32xf32, #tpu.memory_space<vmem>>, vector<1x8x32xf32>,
    } else {
    }
    return
  }
  func.func @transform_0(%arg0: i32, %arg1: i32, %arg2: i32) -> (i32, i32, i32) {
    %c0_i32 = arith.constant 0 : i32
    return %arg0, %arg2, %arg1 : i32, i32, i32
  }
  func.func @transform_1(%arg0: i32, %arg1: i32, %arg2: i32) -> (i32, i32, i32, i32) {
    %c0_i32 = arith.constant 0 : i32
    %c0_i32_0 = arith.constant 0 : i32
    return %arg0, %arg2, %arg1, %c0_i32 : i32, i32, i32, i32
  }
  func.func @transform_2(%arg0: i32, %arg1: i32, %arg2: i32) -> (i32, i32, i32, i32) {
    %c0_i32 = arith.constant 0 : i32
    %c0_i32_0 = arith.constant 0 : i32
    return %arg0, %c0_i32, %arg2, %arg1 : i32, i32, i32, i32
  }
  func.func @transform_3(%arg0: i32, %arg1: i32, %arg2: i32) -> (i32, i32, i32) {
    %c0_i32 = arith.constant 0 : i32
    %c0_i32_0 = arith.constant 0 : i32
    return %arg0, %arg1, %c0_i32 : i32, i32, i32
  }
  func.func @transform_4(%arg0: i32, %arg1: i32, %arg2: i32) -> (i32, i32, i32) {
    %c0_i32 = arith.constant 0 : i32
    %c0_i32_0 = arith.constant 0 : i32
    %c0_i32_1 = arith.constant 0 : i32
    %c0_i32_2 = arith.constant 0 : i32
    return %c0_i32, %c0_i32_0, %c0_i32_1 : i32, i32, i32
  }
  func.func @transform_5(%arg0: i32, %arg1: i32, %arg2: i32) -> (i32, i32, i32) {
    %c0_i32 = arith.constant 0 : i32
    %c0_i32_0 = arith.constant 0 : i32
    %c0_i32_1 = arith.constant 0 : i32
    %c0_i32_2 = arith.constant 0 : i32
    return %c0_i32, %c0_i32_0, %c0_i32_1 : i32, i32, i32
  }
  func.func @transform_6(%arg0: i32, %arg1: i32, %arg2: i32) -> (i32, i32, i32) {
    %c0_i32 = arith.constant 0 : i32
    %c0_i32_0 = arith.constant 0 : i32
    %c0_i32_1 = arith.constant 0 : i32
    %c0_i32_2 = arith.constant 0 : i32
    return %c0_i32, %c0_i32_0, %c0_i32_1 : i32, i32, i32
  }
  func.func @transform_7(%arg0: i32, %arg1: i32, %arg2: i32) -> (i32, i32, i32) {
    %c0_i32 = arith.constant 0 : i32
    %c0_i32_0 = arith.constant 0 : i32
    %c0_i32_1 = arith.constant 0 : i32
    %c0_i32_2 = arith.constant 0 : i32
    return %c0_i32, %c0_i32_0, %c0_i32_1 : i32, i32, i32
  }
  func.func @transform_8(%arg0: i32, %arg1: i32, %arg2: i32) -> (i32, i32, i32) {
    %c0_i32 = arith.constant 0 : i32
    %c0_i32_0 = arith.constant 0 : i32
    return %arg0, %arg1, %c0_i32 : i32, i32, i32
  }
}

</mosaic_0001>

<llo_original>
// kernel: tpu_custom_call.1
$region0: #{tpu_custom_call.1}
  #allocation0 [shape = 'u32[]', space=smem, size = 0x4, offset = 0x4, fixed_abs, tag = 'smem constant byte address 0x4 - core index']
  #allocation1 [shape = 'u32[144,128]{1,0:T(1,128)}', space=vmem, size = 0x12000, scoped, tag = 'internal scratch']
  #allocation2 [shape = 'f32[4,1,8,32]{3,2,1,0:T(8,128)}', space=vmem, size = 0x4000, scoped, tag = 'scratch operand']
  %s0 = inlined_call_operand.hbm [shape: f32[2,8,8], index: 0, kind: input, shape index: {}]
  %s1 = inlined_call_operand.hbm [shape: f32[2,8,8,32], index: 1, kind: input, shape index: {}]
  %s2 = inlined_call_operand.hbm [shape: s8[2,4,8,8], index: 2, kind: input, shape index: {}]
  %s3 = inlined_call_operand.hbm [shape: f32[2,8,32], index: 3, kind: input, shape index: {}]
  %s4 = inlined_call_operand.hbm [shape: f32[3,32,32], index: 4, kind: input, shape index: {}]
  %s5 = inlined_call_operand.hbm [shape: f32[3,32,32], index: 5, kind: input, shape index: {}]
  %s6 = inlined_call_operand.vmem [shape: f32[3,1,32], index: 6, kind: input, shape index: {}]
  %s7 = inlined_call_operand.vmem [shape: f32[3,1,32], index: 7, kind: input, shape index: {}]
  %s8 = inlined_call_operand.hbm [shape: f32[2,8,32], index: 8, kind: output, shape index: {}]
  %s9 = sld [smem:[#allocation0]]
  $region97: #{tpu_custom_call.1} parent=0
    _
  %s11 = ssub.s32 1, %s9
  %s12 = scalar_select 0, %s11, %s9
  $region1: #{tpu_custom_call.1} parent=0
    #allocation3 [shape = 'u8[8192]{0}', space=vmem, size = 0x2000, scoped, tag = 'input window, operand 0']
    #allocation4 [shape = 's32[2]{0}', space=sflag, size = 0x8, scoped, tag = 'scoped memory for tpu_custom_call.1']
    #allocation5 [shape = 's32[2]{0}', space=sflag, size = 0x8, scoped, tag = 'scoped memory for tpu_custom_call.1']
    #allocation6 [shape = 'u8[65536]{0}', space=vmem, size = 0x10000, scoped, tag = 'input window, operand 1']
    #allocation7 [shape = 's32[2]{0}', space=sflag, size = 0x8, scoped, tag = 'scoped memory for tpu_custom_call.1']
    #allocation8 [shape = 'u8[8192]{0}', space=vmem, size = 0x2000, scoped, tag = 'input window, operand 2']
    #allocation9 [shape = 'u8[8192]{0}', space=vmem, size = 0x2000, scoped, tag = 'input window, operand 3']
    #allocation10 [shape = 's32[2]{0}', space=sflag, size = 0x8, scoped, tag = 'scoped memory for tpu_custom_call.1']
    #allocation11 [shape = 'u8[49152]{0}', space=vmem, size = 0xc000, scoped, tag = 'input window, operand 4, single buffered']
    #allocation12 [shape = 'u8[49152]{0}', space=vmem, size = 0xc000, scoped, tag = 'input window, operand 5, single buffered']
    #allocation13 [shape = 's32[1]{0}', space=sflag, size = 0x4, scoped, tag = 'scoped memory for tpu_custom_call.1']
    #allocation14 [shape = 'u8[8192]{0}', space=vmem, size = 0x2000, scoped, tag = 'output window, operand 0']
    %13 = vsyncpa [#allocation4], 0
    %s14 = scalar_lea.sflag [#allocation4], 1
    %15 = vsyncpa %s14, 0
    %16 = vsyncpa [#allocation7], 0
    %s17 = scalar_lea.sflag [#allocation7], 1
    %18 = vsyncpa %s17, 0
    %19 = vsyncpa [#allocation10], 0
    %s20 = scalar_lea.sflag [#allocation10], 1
    %21 = vsyncpa %s20, 0
    %22 = vsyncpa [#allocation13], 0
    %23 = vsyncpa [#allocation5], 0
    %s24 = scalar_lea.sflag [#allocation5], 1
    %25 = vsyncpa %s24, 0
    loop: start=0, step=1, limit=4
    $region2: #{tpu_custom_call.1} parent=1 // loop_pre_header
      _
    $region3: #{tpu_custom_call.1} parent=1 // loop_header
      %s27 = sphi 0, %s31
      %p28 = scmp.ge.s32.totalorder %s27, 4
      %s34 = sphi 0, %s53
      %s35 = sphi 0, %s49
      %s36 = sphi 0, %s45
      %s37 = sphi 0, %s34
      %s38 = sphi 0, %s35
      %s39 = sphi 0, %s36
      %s40 = sphi 0, %s37
      %s41 = sphi 0, %s38
      %s42 = sphi 0, %s39
      %s60 = sphi 0, %s62
      %s63 = sphi 0, %s60
      %s64 = sphi 0, %s63
      %s80 = sphi 0, %s64
      %s90 = sphi 0, %s92
      %s93 = sphi 0, %s90
      %s94 = sphi 0, %s93
      %s110 = sphi 0, %s94
      %s120 = sphi 0, %s122
      %s123 = sphi 0, %s120
      %s124 = sphi 0, %s123
      %s140 = sphi 0, %s124
      %s148 = sphi 0, %s150
      %s151 = sphi 0, %s148
      %s152 = sphi 0, %s151
      %s168 = sphi 0, %s152
      %s172 = sphi 0, %s172
      %s174 = sphi 0, %s172
      %s175 = sphi 0, %s174
      %s189 = sphi 0, %s175
      %s193 = sphi 0, %s193
      %s195 = sphi 0, %s193
      %s196 = sphi 0, %s195
      %s210 = sphi 0, %s196
      %s214 = sphi 0, %s214
      %s216 = sphi 0, %s214
      %s217 = sphi 0, %s216
      %s231 = sphi 0, %s217
      %s235 = sphi 0, %s235
      %s237 = sphi 0, %s235
      %s238 = sphi 0, %s237
      %s252 = sphi 0, %s238
      %s260 = sphi 0, %s262
      %s263 = sphi 0, %s260
      %s264 = sphi 0, %s263
      %s280 = sphi 0, %s264
    $region4: #{tpu_custom_call.1} parent=1 // loop_header_branch
      %30 = sbr.rel (%p28) target = $region8
    $region5: #{tpu_custom_call.1} parent=1 // loop_body
      %s32 = ssub.s32 %s27, 1
      %s33 = ssub.s32 %s27, 2
      %s43 = sadd.s32 1, %s36
      %p44 = scmp.ge.s32.totalorder %s43, 1
      %s45 = scalar_select %p44, 0, %s43
      %s46 = sadd.s32 1, %s35
      %s47 = scalar_select %p44, %s46, %s35
      %p48 = scmp.ge.s32.totalorder %s47, 1
      %s49 = scalar_select %p48, 0, %s47
      %s50 = sadd.s32 1, %s34
      %s51 = scalar_select %p48, %s50, %s34
      %p52 = scmp.ge.s32.totalorder %s51, 2
      %s53 = scalar_select %p52, 0, %s51
      %s54 = ssub.s32 %s34, %s53
      %s55 = ssub.s32 %s36, %s45
      %s56 = sor.u32 %s54, %s55
      %s57 = ssub.s32 %s35, %s49
      %s58 = sor.u32 %s56, %s57
      %p59 = scmp.eq.s32.totalorder %s58, 0
      %s61 = sadd.s32 %s60, 1
      %s62 = scalar_select %p59, %s60, %s61
      %p65 = pneg %p59
      %p66 = scmp.eq.s32.totalorder %s27, 1
      %p67 = por %p65, %p66
      %p68 = scmp.ne.s32.totalorder %s60, %s63
      %p69 = scmp.eq.s32.totalorder %s27, 0
      %p70 = por %p68, %p69
      %p71 = scmp.ne.s32.totalorder %s60, %s63
      %p72 = scmp.eq.s32.totalorder %s32, 1
      %p73 = por %p71, %p72
      %p74 = scmp.ne.s32.totalorder %s63, %s64
      %p75 = scmp.eq.s32.totalorder %s32, 0
      %p76 = por %p74, %p75
      %p77 = scmp.ne.s32.totalorder %s63, %s64
      %p78 = scmp.eq.s32.totalorder %s33, 1
      %p79 = por %p77, %p78
      %p81 = scmp.ne.s32.totalorder %s64, %s80
      %p82 = scmp.eq.s32.totalorder %s33, 0
      %p83 = por %p81, %p82
      %s84 = ssub.s32 %s34, %s53
      %s85 = ssub.s32 %s36, %s45
      %s86 = sor.u32 %s84, %s85
      %s87 = ssub.s32 %s35, %s49
      %s88 = sor.u32 %s86, %s87
      %p89 = scmp.eq.s32.totalorder %s88, 0
      %s91 = sadd.s32 %s90, 1
      %s92 = scalar_select %p89, %s90, %s91
      %p95 = pneg %p89
      %p96 = scmp.eq.s32.totalorder %s27, 1
      %p97 = por %p95, %p96
      %p98 = scmp.ne.s32.totalorder %s90, %s93
      %p99 = scmp.eq.s32.totalorder %s27, 0
      %p100 = por %p98, %p99
      %p101 = scmp.ne.s32.totalorder %s90, %s93
      %p102 = scmp.eq.s32.totalorder %s32, 1
      %p103 = por %p101, %p102
      %p104 = scmp.ne.s32.totalorder %s93, %s94
      %p105 = scmp.eq.s32.totalorder %s32, 0
      %p106 = por %p104, %p105
      %p107 = scmp.ne.s32.totalorder %s93, %s94
      %p108 = scmp.eq.s32.totalorder %s33, 1
      %p109 = por %p107, %p108
      %p111 = scmp.ne.s32.totalorder %s94, %s110
      %p112 = scmp.eq.s32.totalorder %s33, 0
      %p113 = por %p111, %p112
      %s114 = ssub.s32 %s34, %s53
      %s115 = ssub.s32 %s36, %s45
      %s116 = sor.u32 %s114, %s115
      %s117 = ssub.s32 %s35, %s49
      %s118 = sor.u32 %s116, %s117
      %p119 = scmp.eq.s32.totalorder %s118, 0
      %s121 = sadd.s32 %s120, 1
      %s122 = scalar_select %p119, %s120, %s121
      %p125 = pneg %p119
      %p126 = scmp.eq.s32.totalorder %s27, 1
      %p127 = por %p125, %p126
      %p128 = scmp.ne.s32.totalorder %s120, %s123
      %p129 = scmp.eq.s32.totalorder %s27, 0
      %p130 = por %p128, %p129
      %p131 = scmp.ne.s32.totalorder %s120, %s123
      %p132 = scmp.eq.s32.totalorder %s32, 1
      %p133 = por %p131, %p132
      %p134 = scmp.ne.s32.totalorder %s123, %s124
      %p135 = scmp.eq.s32.totalorder %s32, 0
      %p136 = por %p134, %p135
      %p137 = scmp.ne.s32.totalorder %s123, %s124
      %p138 = scmp.eq.s32.totalorder %s33, 1
      %p139 = por %p137, %p138
      %p141 = scmp.ne.s32.totalorder %s124, %s140
      %p142 = scmp.eq.s32.totalorder %s33, 0
      %p143 = por %p141, %p142
      %s144 = ssub.s32 %s34, %s53
      %s145 = ssub.s32 %s35, %s49
      %s146 = sor.u32 %s144, %s145
      %p147 = scmp.eq.s32.totalorder %s146, 0
      %s149 = sadd.s32 %s148, 1
      %s150 = scalar_select %p147, %s148, %s149
      %p153 = pneg %p147
      %p154 = scmp.eq.s32.totalorder %s27, 1
      %p155 = por %p153, %p154
      %p156 = scmp.ne.s32.totalorder %s148, %s151
      %p157 = scmp.eq.s32.totalorder %s27, 0
      %p158 = por %p156, %p157
      %p159 = scmp.ne.s32.totalorder %s148, %s151
      %p160 = scmp.eq.s32.totalorder %s32, 1
      %p161 = por %p159, %p160
      %p162 = scmp.ne.s32.totalorder %s151, %s152
      %p163 = scmp.eq.s32.totalorder %s32, 0
      %p164 = por %p162, %p163
      %p165 = scmp.ne.s32.totalorder %s151, %s152
      %p166 = scmp.eq.s32.totalorder %s33, 1
      %p167 = por %p165, %p166
      %p169 = scmp.ne.s32.totalorder %s152, %s168
      %p170 = scmp.eq.s32.totalorder %s33, 0
      %p171 = por %p169, %p170
      %s173 = sadd.s32 %s172, 1
      %p176 = scmp.eq.s32.totalorder %s27, 1
      %p177 = scmp.ne.s32.totalorder %s172, %s174
      %p178 = scmp.eq.s32.totalorder %s27, 0
      %p179 = por %p177, %p178
      %p180 = scmp.ne.s32.totalorder %s172, %s174
      %p181 = scmp.eq.s32.totalorder %s32, 1
      %p182 = por %p180, %p181
      %p183 = scmp.ne.s32.totalorder %s174, %s175
      %p184 = scmp.eq.s32.totalorder %s32, 0
      %p185 = por %p183, %p184
      %p186 = scmp.ne.s32.totalorder %s174, %s175
      %p187 = scmp.eq.s32.totalorder %s33, 1
      %p188 = por %p186, %p187
      %p190 = scmp.ne.s32.totalorder %s175, %s189
      %p191 = scmp.eq.s32.totalorder %s33, 0
      %p192 = por %p190, %p191
      %s194 = sadd.s32 %s193, 1
      %p197 = scmp.eq.s32.totalorder %s27, 1
      %p198 = scmp.ne.s32.totalorder %s193, %s195
      %p199 = scmp.eq.s32.totalorder %s27, 0
      %p200 = por %p198, %p199
      %p201 = scmp.ne.s32.totalorder %s193, %s195
      %p202 = scmp.eq.s32.totalorder %s32, 1
      %p203 = por %p201, %p202
      %p204 = scmp.ne.s32.totalorder %s195, %s196
      %p205 = scmp.eq.s32.totalorder %s32, 0
      %p206 = por %p204, %p205
      %p207 = scmp.ne.s32.totalorder %s195, %s196
      %p208 = scmp.eq.s32.totalorder %s33, 1
      %p209 = por %p207, %p208
      %p211 = scmp.ne.s32.totalorder %s196, %s210
      %p212 = scmp.eq.s32.totalorder %s33, 0
      %p213 = por %p211, %p212
      %s215 = sadd.s32 %s214, 1
      %p218 = scmp.eq.s32.totalorder %s27, 1
      %p219 = scmp.ne.s32.totalorder %s214, %s216
      %p220 = scmp.eq.s32.totalorder %s27, 0
      %p221 = por %p219, %p220
      %p222 = scmp.ne.s32.totalorder %s214, %s216
      %p223 = scmp.eq.s32.totalorder %s32, 1
      %p224 = por %p222, %p223
      %p225 = scmp.ne.s32.totalorder %s216, %s217
      %p226 = scmp.eq.s32.totalorder %s32, 0
      %p227 = por %p225, %p226
      %p228 = scmp.ne.s32.totalorder %s216, %s217
      %p229 = scmp.eq.s32.totalorder %s33, 1
      %p230 = por %p228, %p229
      %p232 = scmp.ne.s32.totalorder %s217, %s231
      %p233 = scmp.eq.s32.totalorder %s33, 0
      %p234 = por %p232, %p233
      %s236 = sadd.s32 %s235, 1
      %p239 = scmp.eq.s32.totalorder %s27, 1
      %p240 = scmp.ne.s32.totalorder %s235, %s237
      %p241 = scmp.eq.s32.totalorder %s27, 0
      %p242 = por %p240, %p241
      %p243 = scmp.ne.s32.totalorder %s235, %s237
      %p244 = scmp.eq.s32.totalorder %s32, 1
      %p245 = por %p243, %p244
      %p246 = scmp.ne.s32.totalorder %s237, %s238
      %p247 = scmp.eq.s32.totalorder %s32, 0
      %p248 = por %p246, %p247
      %p249 = scmp.ne.s32.totalorder %s237, %s238
      %p250 = scmp.eq.s32.totalorder %s33, 1
      %p251 = por %p249, %p250
      %p253 = scmp.ne.s32.totalorder %s238, %s252
      %p254 = scmp.eq.s32.totalorder %s33, 0
      %p255 = por %p253, %p254
      %s256 = ssub.s32 %s34, %s53
      %s257 = ssub.s32 %s35, %s49
      %s258 = sor.u32 %s256, %s257
      %p259 = scmp.eq.s32.totalorder %s258, 0
      %s261 = sadd.s32 %s260, 1
      %s262 = scalar_select %p259, %s260, %s261
      %p265 = pneg %p259
      %p266 = scmp.eq.s32.totalorder %s27, 1
      %p267 = por %p265, %p266
      %p268 = scmp.ne.s32.totalorder %s260, %s263
      %p269 = scmp.eq.s32.totalorder %s27, 0
      %p270 = por %p268, %p269
      %p271 = scmp.ne.s32.totalorder %s260, %s263
      %p272 = scmp.eq.s32.totalorder %s32, 1
      %p273 = por %p271, %p272
      %p274 = scmp.ne.s32.totalorder %s263, %s264
      %p275 = scmp.eq.s32.totalorder %s32, 0
      %p276 = por %p274, %p275
      %p277 = scmp.ne.s32.totalorder %s263, %s264
      %p278 = scmp.eq.s32.totalorder %s33, 1
      %p279 = por %p277, %p278
      %p281 = scmp.ne.s32.totalorder %s264, %s280
      %p282 = scmp.eq.s32.totalorder %s33, 0
      %p283 = por %p281, %p282
      %p284 = scmp.le.s32.totalorder 1, %s27
      %p285 = scmp.lt.s32.totalorder %s27, 3
      %p286 = pnand %p284, %p285
      %p287 = pneg %p286
      // Predicated region
      $region9: #{tpu_custom_call.1} parent=5 // pred_check
        _
      $region10: #{tpu_custom_call.1} parent=5 // pred_check_branch
        %289 = sbr.rel (%p286) target = $region12
      $region11: #{tpu_custom_call.1} parent=5 // pred_region
        %s290 = ssub.s32 %s27, 1
        // Predicated region
        $region13: #{tpu_custom_call.1} parent=11 // pred_check
          %p291 = pneg %p185
        $region14: #{tpu_custom_call.1} parent=11 // pred_check_branch
          %293 = sbr.rel (%p291) target = $region16
        $region15: #{tpu_custom_call.1} parent=11 // pred_region
          %s295 = ssub.s32 1536, 1536
          %296 = vsyncadd [#allocation10], %s295
          %s297 = sshll.u32 [#allocation11], 4
          %s298 = int_to_ptr.vmem [resolvable:$true] %s297
          %303 = dma.hbm_to_vmem [thread:$0]  %s4, 1536, %s298, [#allocation10], 128, 128, 8
        $region16: #{tpu_custom_call.1} parent=11 // pred_fallthru
          _
        // Predicated region
        $region17: #{tpu_custom_call.1} parent=11 // pred_check
          %p304 = pneg %p206
        $region18: #{tpu_custom_call.1} parent=11 // pred_check_branch
          %306 = sbr.rel (%p304) target = $region20
        $region19: #{tpu_custom_call.1} parent=11 // pred_region
          %s308 = ssub.s32 1536, 1536
          %309 = vsyncadd [#allocation13], %s308
          %s310 = sshll.u32 [#allocation12], 4
          %s311 = int_to_ptr.vmem [resolvable:$true] %s310
          %316 = dma.hbm_to_vmem [thread:$0]  %s5, 1536, %s311, [#allocation13], 128, 128, 8
        $region20: #{tpu_custom_call.1} parent=11 // pred_fallthru
          _
        // Predicated region
        $region21: #{tpu_custom_call.1} parent=11 // pred_check
          %p317 = pneg %p227
        $region22: #{tpu_custom_call.1} parent=11 // pred_check_branch
          %319 = sbr.rel (%p317) target = $region24
        $region23: #{tpu_custom_call.1} parent=11 // pred_region
          _
        $region24: #{tpu_custom_call.1} parent=11 // pred_fallthru
          _
        // Predicated region
        $region25: #{tpu_custom_call.1} parent=11 // pred_check
          %p320 = pneg %p248
        $region26: #{tpu_custom_call.1} parent=11 // pred_check_branch
          %322 = sbr.rel (%p320) target = $region28
        $region27: #{tpu_custom_call.1} parent=11 // pred_region
          _
        $region28: #{tpu_custom_call.1} parent=11 // pred_fallthru
          _
      $region12: #{tpu_custom_call.1} parent=5 // pred_fallthru
        _
      %p323 = scmp.lt.s32.totalorder %s27, 2
      // Predicated region
      $region29: #{tpu_custom_call.1} parent=5 // pred_check
        %p324 = pneg %p323
      $region30: #{tpu_custom_call.1} parent=5 // pred_check_branch
        %326 = sbr.rel (%p324) target = $region32
      $region31: #{tpu_custom_call.1} parent=5 // pred_region
        // Predicated region
        $region33: #{tpu_custom_call.1} parent=31 // pred_check
          %p327 = pneg %p70
        $region34: #{tpu_custom_call.1} parent=31 // pred_check_branch
          %329 = sbr.rel (%p327) target = $region36
        $region35: #{tpu_custom_call.1} parent=31 // pred_region
          %s330 = sand.u32 %s60, 1
          %s331 = scalar_lea.sflag [#allocation4], %s330
          %s332 = sand.u32 %s60, 1
          %s333 = smul.addr %s332, 8
          %s334 = scalar_lea.vmem [#allocation3], %s333
          %s336 = ssub.s32 128, 128
          %337 = vsyncadd %s331, %s336
          %s338 = sadd.s32 %s35, %s36
          %s339 = sadd.s32 %s338, %s34
          %s340 = smul.addr %s339, 128
          %s341 = scalar_lea.hbm %s0, %s340
          %s343 = sshll.u32 %s334, 4
          %s344 = int_to_ptr.vmem [resolvable:$true] %s343
          %346 = dma.hbm_to_vmem [thread:$0]  %s341, 128, %s344, %s331
        $region36: #{tpu_custom_call.1} parent=31 // pred_fallthru
          _
        // Predicated region
        $region37: #{tpu_custom_call.1} parent=31 // pred_check
          %p347 = pneg %p100
        $region38: #{tpu_custom_call.1} parent=31 // pred_check_branch
          %349 = sbr.rel (%p347) target = $region40
        $region39: #{tpu_custom_call.1} parent=31 // pred_region
          %s350 = sand.u32 %s27, 1
          %s351 = scalar_lea.sflag [#allocation7], %s350
          %s352 = sand.u32 %s90, 1
          %s353 = smul.addr %s352, 64
          %s354 = scalar_lea.vmem [#allocation6], %s353
          %s355 = smul.u32 8, %s36
          %s357 = ssub.s32 1024, 1024
          %358 = vsyncadd %s351, %s357
          %s359 = sadd.s32 %s35, %s355
          %s360 = smul.addr %s34, 8
          %s361 = sadd.s32 %s359, %s360
          %s362 = smul.addr %s361, 128
          %s363 = scalar_lea.hbm %s1, %s362
          %s364 = sshll.u32 %s354, 4
          %s365 = int_to_ptr.vmem [resolvable:$true] %s364
          %370 = dma.hbm_to_vmem [thread:$0]  %s363, 1024, %s365, %s351, 128, 128, 8
        $region40: #{tpu_custom_call.1} parent=31 // pred_fallthru
          _
        // Predicated region
        $region41: #{tpu_custom_call.1} parent=31 // pred_check
          %p371 = pneg %p130
        $region42: #{tpu_custom_call.1} parent=31 // pred_check_branch
          %373 = sbr.rel (%p371) target = $region44
        $region43: #{tpu_custom_call.1} parent=31 // pred_region
          %s374 = sand.u32 %s27, 1
          %s375 = scalar_lea.sflag [#allocation7], %s374
          %s376 = sand.u32 %s120, 1
          %s377 = smul.addr %s376, 8
          %s378 = scalar_lea.vmem [#allocation8], %s377
          %s380 = ssub.s32 128, 128
          %381 = vsyncadd %s375, %s380
          %s382 = sadd.s32 %s35, %s36
          %s383 = smul.addr %s34, 4
          %s384 = sadd.s32 %s382, %s383
          %s385 = smul.addr %s384, 32
          %s386 = scalar_lea.hbm %s2, %s385
          %s387 = sshll.u32 %s378, 4
          %s388 = int_to_ptr.vmem [resolvable:$true] %s387
          %393 = dma.hbm_to_vmem [thread:$0]  %s386, 128, %s388, %s375, 32, 32, 2
        $region44: #{tpu_custom_call.1} parent=31 // pred_fallthru
          _
        // Predicated region
        $region45: #{tpu_custom_call.1} parent=31 // pred_check
          %p394 = pneg %p158
        $region46: #{tpu_custom_call.1} parent=31 // pred_check_branch
          %396 = sbr.rel (%p394) target = $region48
        $region47: #{tpu_custom_call.1} parent=31 // pred_region
          %s397 = sand.u32 %s27, 1
          %s398 = scalar_lea.sflag [#allocation10], %s397
          %s399 = sand.u32 %s148, 1
          %s400 = smul.addr %s399, 8
          %s401 = scalar_lea.vmem [#allocation9], %s400
          %s403 = ssub.s32 128, 128
          %404 = vsyncadd %s398, %s403
          %s405 = sadd.s32 %s35, %s34
          %s406 = smul.addr %s405, 128
          %s407 = scalar_lea.hbm %s3, %s406
          %s409 = sshll.u32 %s401, 4
          %s410 = int_to_ptr.vmem [resolvable:$true] %s409
          %412 = dma.hbm_to_vmem [thread:$0]  %s407, 128, %s410, %s398
        $region48: #{tpu_custom_call.1} parent=31 // pred_fallthru
          _
      $region32: #{tpu_custom_call.1} parent=5 // pred_fallthru
        _
      %p413 = scmp.le.s32.totalorder 1, %s27
      %p414 = scmp.lt.s32.totalorder %s27, 3
      %p415 = pnand %p413, %p414
      %p416 = pneg %p415
      // Predicated region
      $region49: #{tpu_custom_call.1} parent=5 // pred_check
        _
      $region50: #{tpu_custom_call.1} parent=5 // pred_check_branch
        %418 = sbr.rel (%p415) target = $region52
      $region51: #{tpu_custom_call.1} parent=5 // pred_region
        %s419 = ssub.s32 %s27, 1
        %s420 = sand.u32 %s63, 1
        %s421 = scalar_lea.sflag [#allocation4], %s420
        %s422 = sand.u32 %s63, 1
        %s423 = smul.addr %s422, 8
        %s424 = scalar_lea.vmem [#allocation3], %s423
        // Predicated region
        $region53: #{tpu_custom_call.1} parent=51 // pred_check
          %p425 = pneg %p76
        $region54: #{tpu_custom_call.1} parent=51 // pred_check_branch
          %427 = sbr.rel (%p425) target = $region56
        $region55: #{tpu_custom_call.1} parent=51 // pred_region
          %428 = dma.done %s421, 128
        $region56: #{tpu_custom_call.1} parent=51 // pred_fallthru
          _
        %s429 = sand.u32 %s32, 1
        %s430 = scalar_lea.sflag [#allocation7], %s429
        %s431 = sand.u32 %s93, 1
        %s432 = smul.addr %s431, 64
        %s433 = scalar_lea.vmem [#allocation6], %s432
        // Predicated region
        $region57: #{tpu_custom_call.1} parent=51 // pred_check
          %p434 = pneg %p106
        $region58: #{tpu_custom_call.1} parent=51 // pred_check_branch
          %436 = sbr.rel (%p434) target = $region60
        $region59: #{tpu_custom_call.1} parent=51 // pred_region
          %437 = dma.done %s430, 1024
        $region60: #{tpu_custom_call.1} parent=51 // pred_fallthru
          _
        %s438 = sand.u32 %s32, 1
        %s439 = scalar_lea.sflag [#allocation7], %s438
        %s440 = sand.u32 %s123, 1
        %s441 = smul.addr %s440, 8
        %s442 = scalar_lea.vmem [#allocation8], %s441
        // Predicated region
        $region61: #{tpu_custom_call.1} parent=51 // pred_check
          %p443 = pneg %p136
        $region62: #{tpu_custom_call.1} parent=51 // pred_check_branch
          %445 = sbr.rel (%p443) target = $region64
        $region63: #{tpu_custom_call.1} parent=51 // pred_region
          %446 = dma.done %s439, 128
        $region64: #{tpu_custom_call.1} parent=51 // pred_fallthru
          _
        %s447 = sand.u32 %s32, 1
        %s448 = scalar_lea.sflag [#allocation10], %s447
        %s449 = sand.u32 %s151, 1
        %s450 = smul.addr %s449, 8
        %s451 = scalar_lea.vmem [#allocation9], %s450
        // Predicated region
        $region65: #{tpu_custom_call.1} parent=51 // pred_check
          %p452 = pneg %p164
        $region66: #{tpu_custom_call.1} parent=51 // pred_check_branch
          %454 = sbr.rel (%p452) target = $region68
        $region67: #{tpu_custom_call.1} parent=51 // pred_region
          %455 = dma.done %s448, 128
        $region68: #{tpu_custom_call.1} parent=51 // pred_fallthru
          _
        // Predicated region
        $region69: #{tpu_custom_call.1} parent=51 // pred_check
          %p456 = pneg %p185
        $region70: #{tpu_custom_call.1} parent=51 // pred_check_branch
          %458 = sbr.rel (%p456) target = $region72
        $region71: #{tpu_custom_call.1} parent=51 // pred_region
          %459 = dma.done [#allocation10], 1536
        $region72: #{tpu_custom_call.1} parent=51 // pred_fallthru
          _
        // Predicated region
        $region73: #{tpu_custom_call.1} parent=51 // pred_check
          %p460 = pneg %p206
        $region74: #{tpu_custom_call.1} parent=51 // pred_check_branch
          %462 = sbr.rel (%p460) target = $region76
        $region75: #{tpu_custom_call.1} parent=51 // pred_region
          %463 = dma.done [#allocation13], 1536
        $region76: #{tpu_custom_call.1} parent=51 // pred_fallthru
          _
        %s464 = sand.u32 %s63, 1
        %s465 = scalar_lea.sflag [#allocation4], %s464
        %s466 = sand.u32 %s63, 1
        %s467 = smul.addr %s466, 8
        %s468 = scalar_lea.vmem [#allocation3], %s467
        %p469 = pneg %p76
        %p470 = pneg %p73
        %s471 = sand.u32 %s32, 1
        %s472 = scalar_lea.sflag [#allocation7], %s471
        %s473 = sand.u32 %s93, 1
        %s474 = smul.addr %s473, 64
        %s475 = scalar_lea.vmem [#allocation6], %s474
        %p476 = pneg %p106
        %p477 = pneg %p103
        %s478 = sand.u32 %s32, 1
        %s479 = scalar_lea.sflag [#allocation7], %s478
        %s480 = sand.u32 %s123, 1
        %s481 = smul.addr %s480, 8
        %s482 = scalar_lea.vmem [#allocation8], %s481
        %p483 = pneg %p136
        %p484 = pneg %p133
        %s485 = sand.u32 %s32, 1
        %s486 = scalar_lea.sflag [#allocation10], %s485
        %s487 = sand.u32 %s151, 1
        %s488 = smul.addr %s487, 8
        %s489 = scalar_lea.vmem [#allocation9], %s488
        %p490 = pneg %p164
        %p491 = pneg %p161
        %p492 = pneg %p185
        %p493 = pneg %p182
        %p494 = pneg %p206
        %p495 = pneg %p203
        %p496 = pneg %p227
        %p497 = pneg %p224
        %p498 = pneg %p248
        %p499 = pneg %p245
        %p500 = pneg %p276
        %p501 = pneg %p273
        %s502 = sand.u32 %s263, 1
        %s503 = scalar_lea.sflag [#allocation5], %s502
        %s504 = sand.u32 %s263, 1
        %s505 = smul.addr %s504, 8
        %s506 = scalar_lea.vmem [#allocation14], %s505
        %s507 = smul.u32 8, %s39
        %p508 = scmp.eq.s32.totalorder %s39, 0
        // Predicated region
        $region77: #{tpu_custom_call.1} parent=51 // pred_check
          %p509 = pneg %p508
        $region78: #{tpu_custom_call.1} parent=51 // pred_check_branch
          %511 = sbr.rel (%p509) target = $region80
        $region79: #{tpu_custom_call.1} parent=51 // pred_region
          %vm512 = vcmask 261120
          %513 = vst.msk [vmem:[#allocation2] sm:$0xff] %vm512, 0.0
          %514 = vst.msk [vmem:[#allocation2 + $0x8] sm:$0xff] %vm512, 0.0
          %515 = vst.msk [vmem:[#allocation2 + $0x10] sm:$0xff] %vm512, 0.0
          %516 = vst.msk [vmem:[#allocation2 + $0x18] sm:$0xff] %vm512, 0.0
        $region80: #{tpu_custom_call.1} parent=51 // pred_fallthru
          _
        %v517 = vld [vmem:[%s424] sm:$0xff]
        %v518 = vld [vmem:[%s433] sm:$0xff]
        %v519 = vld [vmem:[%s433 + $0x8] sm:$0xff]
        %v520 = vld [vmem:[%s433 + $0x10] sm:$0xff]
        %v521 = vld [vmem:[%s433 + $0x18] sm:$0xff]
        %v522 = vld [vmem:[%s433 + $0x20] sm:$0xff]
        %v523 = vld [vmem:[%s433 + $0x28] sm:$0xff]
        %v524 = vld [vmem:[%s433 + $0x30] sm:$0xff]
        %v525 = vld [vmem:[%s433 + $0x38] sm:$0xff]
        %v526 = vld [vmem:[%s442] sm:$0x3]
        %v527 = vld [vmem:[%s442 + $0x2] sm:$0x3]
        %v528 = vld [vmem:[%s442 + $0x4] sm:$0x3]
        %v529 = vld [vmem:[%s442 + $0x6] sm:$0x3]
        %v530 = vunpack.c.0.s8 %v526
        %v531 = vunpack.c.0.s8 %v527
        %v532 = vunpack.c.0.s8 %v528
        %v533 = vunpack.c.0.s8 %v529
        %v534 = vcvt.s32.f32 %v530
        %v535 = vcvt.s32.f32 %v531
        %v536 = vcvt.s32.f32 %v532
        %v537 = vcvt.s32.f32 %v533
        %v538 = vmul.f32 %v534, %v517
        %v539 = vmul.f32 %v535, %v517
        %v540 = vmul.f32 %v536, %v517
        %v541 = vmul.f32 %v537, %v517
        %v542 = vlaneseq
        %v543 = vshrl.u32 %v542, 7
        %v544 = vsub.s32 0, %v543
        %v545 = vrot.slane %v538, %v544
        %547 = vbcast.lane.b32.xlu0 %v545, 256
        %v548 = vpop.permute.xlu0 %547
        %v549 = vlaneseq
        %v550 = vshrl.u32 %v549, 7
        %v551 = vsub.s32 1, %v550
        %v552 = vrot.slane %v538, %v551
        %554 = vbcast.lane.b32.xlu0 %v552, 256
        %v555 = vpop.permute.xlu0 %554
        %v556 = vlaneseq
        %v557 = vshrl.u32 %v556, 7
        %v558 = vsub.s32 2, %v557
        %v559 = vrot.slane %v538, %v558
        %561 = vbcast.lane.b32.xlu0 %v559, 256
        %v562 = vpop.permute.xlu0 %561
        %v563 = vlaneseq
        %v564 = vshrl.u32 %v563, 7
        %v565 = vsub.s32 3, %v564
        %v566 = vrot.slane %v538, %v565
        %568 = vbcast.lane.b32.xlu0 %v566, 256
        %v569 = vpop.permute.xlu0 %568
        %v570 = vlaneseq
        %v571 = vshrl.u32 %v570, 7
        %v572 = vsub.s32 4, %v571
        %v573 = vrot.slane %v538, %v572
        %575 = vbcast.lane.b32.xlu0 %v573, 256
        %v576 = vpop.permute.xlu0 %575
        %v577 = vlaneseq
        %v578 = vshrl.u32 %v577, 7
        %v579 = vsub.s32 5, %v578
        %v580 = vrot.slane %v538, %v579
        %582 = vbcast.lane.b32.xlu0 %v580, 256
        %v583 = vpop.permute.xlu0 %582
        %v584 = vlaneseq
        %v585 = vshrl.u32 %v584, 7
        %v586 = vsub.s32 6, %v585
        %v587 = vrot.slane %v538, %v586
        %589 = vbcast.lane.b32.xlu0 %v587, 256
        %v590 = vpop.permute.xlu0 %589
        %v591 = vlaneseq
        %v592 = vshrl.u32 %v591, 7
        %v593 = vsub.s32 7, %v592
        %v594 = vrot.slane %v538, %v593
        %596 = vbcast.lane.b32.xlu0 %v594, 256
        %v597 = vpop.permute.xlu0 %596
        %v598 = vmul.f32 %v548, %v518
        %v599 = vmul.f32 %v555, %v519
        %v600 = vmul.f32 %v562, %v520
        %v601 = vmul.f32 %v569, %v521
        %v602 = vmul.f32 %v576, %v522
        %v603 = vmul.f32 %v583, %v523
        %v604 = vmul.f32 %v590, %v524
        %v605 = vmul.f32 %v597, %v525
        %vm606 = vcmask 261120
        %v607 = vsel %vm606, %v598, 0.0
        %v608 = vsel %vm606, %v599, 0.0
        %v609 = vadd.f32 %v607, %v608
        %v610 = vsel %vm606, %v600, 0.0
        %v611 = vadd.f32 %v609, %v610
        %v612 = vsel %vm606, %v601, 0.0
        %v613 = vadd.f32 %v611, %v612
        %v614 = vsel %vm606, %v602, 0.0
        %v615 = vadd.f32 %v613, %v614
        %v616 = vsel %vm606, %v603, 0.0
        %v617 = vadd.f32 %v615, %v616
        %v618 = vsel %vm606, %v604, 0.0
        %v619 = vadd.f32 %v617, %v618
        %v620 = vsel %vm606, %v605, 0.0
        %v621 = vadd.f32 %v619, %v620
        %v622 = vld [vmem:[#allocation2] sm:$0xff]
        %v623 = vadd.f32 %v622, %v621
        %624 = vst.msk [vmem:[#allocation2] sm:$0xff] %vm606, %v623
        %v625 = vlaneseq
        %v626 = vshrl.u32 %v625, 7
        %v627 = vsub.s32 0, %v626
        %v628 = vrot.slane %v539, %v627
        %630 = vbcast.lane.b32.xlu0 %v628, 256
        %v631 = vpop.permute.xlu0 %630
        %v632 = vlaneseq
        %v633 = vshrl.u32 %v632, 7
        %v634 = vsub.s32 1, %v633
        %v635 = vrot.slane %v539, %v634
        %637 = vbcast.lane.b32.xlu0 %v635, 256
        %v638 = vpop.permute.xlu0 %637
        %v639 = vlaneseq
        %v640 = vshrl.u32 %v639, 7
        %v641 = vsub.s32 2, %v640
        %v642 = vrot.slane %v539, %v641
        %644 = vbcast.lane.b32.xlu0 %v642, 256
        %v645 = vpop.permute.xlu0 %644
        %v646 = vlaneseq
        %v647 = vshrl.u32 %v646, 7
        %v648 = vsub.s32 3, %v647
        %v649 = vrot.slane %v539, %v648
        %651 = vbcast.lane.b32.xlu0 %v649, 256
        %v652 = vpop.permute.xlu0 %651
        %v653 = vlaneseq
        %v654 = vshrl.u32 %v653, 7
        %v655 = vsub.s32 4, %v654
        %v656 = vrot.slane %v539, %v655
        %658 = vbcast.lane.b32.xlu0 %v656, 256
        %v659 = vpop.permute.xlu0 %658
        %v660 = vlaneseq
        %v661 = vshrl.u32 %v660, 7
        %v662 = vsub.s32 5, %v661
        %v663 = vrot.slane %v539, %v662
        %665 = vbcast.lane.b32.xlu0 %v663, 256
        %v666 = vpop.permute.xlu0 %665
        %v667 = vlaneseq
        %v668 = vshrl.u32 %v667, 7
        %v669 = vsub.s32 6, %v668
        %v670 = vrot.slane %v539, %v669
        %672 = vbcast.lane.b32.xlu0 %v670, 256
        %v673 = vpop.permute.xlu0 %672
        %v674 = vlaneseq
        %v675 = vshrl.u32 %v674, 7
        %v676 = vsub.s32 7, %v675
        %v677 = vrot.slane %v539, %v676
        %679 = vbcast.lane.b32.xlu0 %v677, 256
        %v680 = vpop.permute.xlu0 %679
        %v681 = vmul.f32 %v631, %v518
        %v682 = vmul.f32 %v638, %v519
        %v683 = vmul.f32 %v645, %v520
        %v684 = vmul.f32 %v652, %v521
        %v685 = vmul.f32 %v659, %v522
        %v686 = vmul.f32 %v666, %v523
        %v687 = vmul.f32 %v673, %v524
        %v688 = vmul.f32 %v680, %v525
        %v689 = vsel %vm606, %v681, 0.0
        %v690 = vsel %vm606, %v682, 0.0
        %v691 = vadd.f32 %v689, %v690
        %v692 = vsel %vm606, %v683, 0.0
        %v693 = vadd.f32 %v691, %v692
        %v694 = vsel %vm606, %v684, 0.0
        %v695 = vadd.f32 %v693, %v694
        %v696 = vsel %vm606, %v685, 0.0
        %v697 = vadd.f32 %v695, %v696
        %v698 = vsel %vm606, %v686, 0.0
        %v699 = vadd.f32 %v697, %v698
        %v700 = vsel %vm606, %v687, 0.0
        %v701 = vadd.f32 %v699, %v700
        %v702 = vsel %vm606, %v688, 0.0
        %v703 = vadd.f32 %v701, %v702
        %s704 = scalar_lea.vmem [#allocation2], 8
        %v705 = vld [vmem:[%s704] sm:$0xff]
        %v706 = vadd.f32 %v705, %v703
        %707 = vst.msk [vmem:[%s704] sm:$0xff] %vm606, %v706
        %v708 = vlaneseq
        %v709 = vshrl.u32 %v708, 7
        %v710 = vsub.s32 0, %v709
        %v711 = vrot.slane %v540, %v710
        %713 = vbcast.lane.b32.xlu0 %v711, 256
        %v714 = vpop.permute.xlu0 %713
        %v715 = vlaneseq
        %v716 = vshrl.u32 %v715, 7
        %v717 = vsub.s32 1, %v716
        %v718 = vrot.slane %v540, %v717
        %720 = vbcast.lane.b32.xlu0 %v718, 256
        %v721 = vpop.permute.xlu0 %720
        %v722 = vlaneseq
        %v723 = vshrl.u32 %v722, 7
        %v724 = vsub.s32 2, %v723
        %v725 = vrot.slane %v540, %v724
        %727 = vbcast.lane.b32.xlu0 %v725, 256
        %v728 = vpop.permute.xlu0 %727
        %v729 = vlaneseq
        %v730 = vshrl.u32 %v729, 7
        %v731 = vsub.s32 3, %v730
        %v732 = vrot.slane %v540, %v731
        %734 = vbcast.lane.b32.xlu0 %v732, 256
        %v735 = vpop.permute.xlu0 %734
        %v736 = vlaneseq
        %v737 = vshrl.u32 %v736, 7
        %v738 = vsub.s32 4, %v737
        %v739 = vrot.slane %v540, %v738
        %741 = vbcast.lane.b32.xlu0 %v739, 256
        %v742 = vpop.permute.xlu0 %741
        %v743 = vlaneseq
        %v744 = vshrl.u32 %v743, 7
        %v745 = vsub.s32 5, %v744
        %v746 = vrot.slane %v540, %v745
        %748 = vbcast.lane.b32.xlu0 %v746, 256
        %v749 = vpop.permute.xlu0 %748
        %v750 = vlaneseq
        %v751 = vshrl.u32 %v750, 7
        %v752 = vsub.s32 6, %v751
        %v753 = vrot.slane %v540, %v752
        %755 = vbcast.lane.b32.xlu0 %v753, 256
        %v756 = vpop.permute.xlu0 %755
        %v757 = vlaneseq
        %v758 = vshrl.u32 %v757, 7
        %v759 = vsub.s32 7, %v758
        %v760 = vrot.slane %v540, %v759
        %762 = vbcast.lane.b32.xlu0 %v760, 256
        %v763 = vpop.permute.xlu0 %762
        %v764 = vmul.f32 %v714, %v518
        %v765 = vmul.f32 %v721, %v519
        %v766 = vmul.f32 %v728, %v520
        %v767 = vmul.f32 %v735, %v521
        %v768 = vmul.f32 %v742, %v522
        %v769 = vmul.f32 %v749, %v523
        %v770 = vmul.f32 %v756, %v524
        %v771 = vmul.f32 %v763, %v525
        %v772 = vsel %vm606, %v764, 0.0
        %v773 = vsel %vm606, %v765, 0.0
        %v774 = vadd.f32 %v772, %v773
        %v775 = vsel %vm606, %v766, 0.0
        %v776 = vadd.f32 %v774, %v775
        %v777 = vsel %vm606, %v767, 0.0
        %v778 = vadd.f32 %v776, %v777
        %v779 = vsel %vm606, %v768, 0.0
        %v780 = vadd.f32 %v778, %v779
        %v781 = vsel %vm606, %v769, 0.0
        %v782 = vadd.f32 %v780, %v781
        %v783 = vsel %vm606, %v770, 0.0
        %v784 = vadd.f32 %v782, %v783
        %v785 = vsel %vm606, %v771, 0.0
        %v786 = vadd.f32 %v784, %v785
        %s787 = scalar_lea.vmem [#allocation2], 16
        %v788 = vld [vmem:[%s787] sm:$0xff]
        %v789 = vadd.f32 %v788, %v786
        %790 = vst.msk [vmem:[%s787] sm:$0xff] %vm606, %v789
        %v791 = vlaneseq
        %v792 = vshrl.u32 %v791, 7
        %v793 = vsub.s32 0, %v792
        %v794 = vrot.slane %v541, %v793
        %796 = vbcast.lane.b32.xlu0 %v794, 256
        %v797 = vpop.permute.xlu0 %796
        %v798 = vlaneseq
        %v799 = vshrl.u32 %v798, 7
        %v800 = vsub.s32 1, %v799
        %v801 = vrot.slane %v541, %v800
        %803 = vbcast.lane.b32.xlu0 %v801, 256
        %v804 = vpop.permute.xlu0 %803
        %v805 = vlaneseq
        %v806 = vshrl.u32 %v805, 7
        %v807 = vsub.s32 2, %v806
        %v808 = vrot.slane %v541, %v807
        %810 = vbcast.lane.b32.xlu0 %v808, 256
        %v811 = vpop.permute.xlu0 %810
        %v812 = vlaneseq
        %v813 = vshrl.u32 %v812, 7
        %v814 = vsub.s32 3, %v813
        %v815 = vrot.slane %v541, %v814
        %817 = vbcast.lane.b32.xlu0 %v815, 256
        %v818 = vpop.permute.xlu0 %817
        %v819 = vlaneseq
        %v820 = vshrl.u32 %v819, 7
        %v821 = vsub.s32 4, %v820
        %v822 = vrot.slane %v541, %v821
        %824 = vbcast.lane.b32.xlu0 %v822, 256
        %v825 = vpop.permute.xlu0 %824
        %v826 = vlaneseq
        %v827 = vshrl.u32 %v826, 7
        %v828 = vsub.s32 5, %v827
        %v829 = vrot.slane %v541, %v828
        %831 = vbcast.lane.b32.xlu0 %v829, 256
        %v832 = vpop.permute.xlu0 %831
        %v833 = vlaneseq
        %v834 = vshrl.u32 %v833, 7
        %v835 = vsub.s32 6, %v834
        %v836 = vrot.slane %v541, %v835
        %838 = vbcast.lane.b32.xlu0 %v836, 256
        %v839 = vpop.permute.xlu0 %838
        %v840 = vlaneseq
        %v841 = vshrl.u32 %v840, 7
        %v842 = vsub.s32 7, %v841
        %v843 = vrot.slane %v541, %v842
        %845 = vbcast.lane.b32.xlu0 %v843, 256
        %v846 = vpop.permute.xlu0 %845
        %v847 = vmul.f32 %v797, %v518
        %v848 = vmul.f32 %v804, %v519
        %v849 = vmul.f32 %v811, %v520
        %v850 = vmul.f32 %v818, %v521
        %v851 = vmul.f32 %v825, %v522
        %v852 = vmul.f32 %v832, %v523
        %v853 = vmul.f32 %v839, %v524
        %v854 = vmul.f32 %v846, %v525
        %v855 = vsel %vm606, %v847, 0.0
        %v856 = vsel %vm606, %v848, 0.0
        %v857 = vadd.f32 %v855, %v856
        %v858 = vsel %vm606, %v849, 0.0
        %v859 = vadd.f32 %v857, %v858
        %v860 = vsel %vm606, %v850, 0.0
        %v861 = vadd.f32 %v859, %v860
        %v862 = vsel %vm606, %v851, 0.0
        %v863 = vadd.f32 %v861, %v862
        %v864 = vsel %vm606, %v852, 0.0
        %v865 = vadd.f32 %v863, %v864
        %v866 = vsel %vm606, %v853, 0.0
        %v867 = vadd.f32 %v865, %v866
        %v868 = vsel %vm606, %v854, 0.0
        %v869 = vadd.f32 %v867, %v868
        %s870 = scalar_lea.vmem [#allocation2], 24
        %v871 = vld [vmem:[%s870] sm:$0xff]
        %v872 = vadd.f32 %v871, %v869
        %873 = vst.msk [vmem:[%s870] sm:$0xff] %vm606, %v872
        // Predicated region
        $region81: #{tpu_custom_call.1} parent=51 // pred_check
          %p874 = pneg %p508
        $region82: #{tpu_custom_call.1} parent=51 // pred_check_branch
          %876 = sbr.rel (%p874) target = $region84
        $region83: #{tpu_custom_call.1} parent=51 // pred_region
          %v877 = vld [vmem:[%s451] sm:$0xff]
          %v878 = vld [vmem:[#allocation2] sm:$0xff]
          %v879 = vld [vmem:[#allocation2 + $0x8] sm:$0xff]
          %v880 = vld [vmem:[#allocation2 + $0x10] sm:$0xff]
          %v881 = vld [vmem:[#allocation2 + $0x18] sm:$0xff]
          %v882 = vld [vmem:[#allocation11] sm:$0xff]
          %v883 = vld [vmem:[#allocation11 + $0x8] sm:$0xff]
          %v884 = vld [vmem:[#allocation11 + $0x10] sm:$0xff]
          %v885 = vld [vmem:[#allocation11 + $0x18] sm:$0xff]
          %v886 = vld [vmem:[%s6] sm:$0x1]
          %v888 = vlaneseq
          %v889 = vshrl.u32 %v888, 7
          %v890 = vsub.s32 0, %v889
          %v891 = vrot.slane %v886, %v890
          %v894 = vsel %vm606, %v878, 0
          %v897 = vsel %vm606, %v879, 0
          %v900 = vsel %vm606, %v880, 0
          %v903 = vsel %vm606, %v881, 0
          %905 = vmatprep.subr.mxu0 0.0
          %906 = vmatpush1.msra.mxu0 0.0
          %907 = vmatprep.subr.mxu0 0.0
          %908 = vmatpush1.msra.mxu0 0.0
          %909 = vmatprep.subr.mxu0 0.0
          %910 = vmatpush1.msra.mxu0 0.0
          %911 = vmatprep.subr.mxu0 0.0
          %912 = vmatpush1.msra.mxu0 0.0
          %913 = vmatprep.subr.mxu0 0.0
          %914 = vmatpush1.msra.mxu0 0.0
          %915 = vmatprep.subr.mxu0 0.0
          %916 = vmatpush1.msra.mxu0 0.0
          %917 = vmatprep.subr.mxu0 0.0
          %918 = vmatpush1.msra.mxu0 0.0
          %919 = vmatprep.subr.mxu0 0.0
          %920 = vmatpush1.msra.mxu0 0.0
          %921 = vmatprep.subr.mxu0 0.0
          %922 = vmatpush1.msra.mxu0 0.0
          %923 = vmatprep.subr.mxu0 0.0
          %924 = vmatpush1.msra.mxu0 0.0
          %925 = vmatprep.subr.mxu0 0.0
          %926 = vmatpush1.msra.mxu0 0.0
          %927 = vmatprep.subr.mxu0 0.0
          %928 = vmatpush1.msra.mxu0 0.0
          %929 = vmatprep.subr.mxu0 0.0
          %930 = vmatpush1.msra.mxu0 %v885
          %931 = vmatprep.subr.mxu0 0.0
          %932 = vmatpush1.msra.mxu0 %v884
          %933 = vmatprep.subr.mxu0 0.0
          %934 = vmatpush1.msra.mxu0 %v883
          %935 = vmatprep.subr.mxu0 0.0
          %936 = vmatpush1.msra.mxu0 %v882
          %937 = vmatprep.subr.mxu0 0.0
          %938 = vmatpush2.msra.mxu0 0.0
          %939 = vmatprep.subr.mxu0 0.0
          %940 = vmatpush2.msra.mxu0 0.0
          %941 = vmatprep.subr.mxu0 0.0
          %942 = vmatpush2.msra.mxu0 0.0
          %943 = vmatprep.subr.mxu0 0.0
          %944 = vmatpush2.msra.mxu0 0.0
          %945 = vmatprep.subr.mxu0 0.0
          %946 = vmatpush2.msra.mxu0 0.0
          %947 = vmatprep.subr.mxu0 0.0
          %948 = vmatpush2.msra.mxu0 0.0
          %949 = vmatprep.subr.mxu0 0.0
          %950 = vmatpush2.msra.mxu0 0.0
          %951 = vmatprep.subr.mxu0 0.0
          %952 = vmatpush2.msra.mxu0 0.0
          %953 = vmatprep.subr.mxu0 0.0
          %954 = vmatpush2.msra.mxu0 0.0
          %955 = vmatprep.subr.mxu0 0.0
          %956 = vmatpush2.msra.mxu0 0.0
          %957 = vmatprep.subr.mxu0 0.0
          %958 = vmatpush2.msra.mxu0 0.0
          %959 = vmatprep.subr.mxu0 0.0
          %960 = vmatpush2.msra.mxu0 0.0
          %961 = vmatprep.subr.mxu0 0.0
          %962 = vmatpush2.msra.mxu0 0.0
          %963 = vmatprep.subr.mxu0 0.0
          %964 = vmatpush2.msra.mxu0 0.0
          %965 = vmatprep.subr.mxu0 0.0
          %966 = vmatpush2.msra.mxu0 0.0
          %967 = vmatprep.subr.mxu0 0.0
          %968 = vmatpush2.msra.mxu0 0.0
          %969 = vmatprep.mubr.f32.mxu0 0.0
          %970 = vmatmul.mubr.f32.gmra.mxu0 %v894
          %v971 = vpop.f32.mrf.mxu0
          %v972 = vadd.f32 %v891, %v971
          %v973 = vpop.f32.mrf.mxu0
          %974 = vmatprep.mubr.f32.mxu0 0.0
          %975 = vmatmul.mubr.f32.gmra.mxu0 %v897
          %v976 = vpop.f32.mrf.mxu0
          %v977 = vadd.f32 %v891, %v976
          %v978 = vpop.f32.mrf.mxu0
          %979 = vmatprep.mubr.f32.mxu0 0.0
          %980 = vmatmul.mubr.f32.gmra.mxu0 %v900
          %v981 = vpop.f32.mrf.mxu0
          %v982 = vadd.f32 %v891, %v981
          %v983 = vpop.f32.mrf.mxu0
          %984 = vmatprep.mubr.f32.mxu0 0.0
          %985 = vmatmul.mubr.f32.gmra.mxu0 %v903
          %v986 = vpop.f32.mrf.mxu0
          %v987 = vadd.f32 %v891, %v986
          %v988 = vpop.f32.mrf.mxu0
          %989 = vdwg.mxu0
          %s990 = scalar_lea.vmem [#allocation11], 32
          %v991 = vld [vmem:[%s990] sm:$0xff]
          %v992 = vld [vmem:[%s990 + $0x8] sm:$0xff]
          %v993 = vld [vmem:[%s990 + $0x10] sm:$0xff]
          %v994 = vld [vmem:[%s990 + $0x18] sm:$0xff]
          %s995 = scalar_lea.vmem %s6, 1
          %v996 = vld [vmem:[%s995] sm:$0x1]
          %v998 = vlaneseq
          %v999 = vshrl.u32 %v998, 7
          %v1000 = vsub.s32 0, %v999
          %v1001 = vrot.slane %v996, %v1000
          %1003 = vmatprep.subr.mxu0 0.0
          %1004 = vmatpush1.msra.mxu0 0.0
          %1005 = vmatprep.subr.mxu0 0.0
          %1006 = vmatpush1.msra.mxu0 0.0
          %1007 = vmatprep.subr.mxu0 0.0
          %1008 = vmatpush1.msra.mxu0 0.0
          %1009 = vmatprep.subr.mxu0 0.0
          %1010 = vmatpush1.msra.mxu0 0.0
          %1011 = vmatprep.subr.mxu0 0.0
          %1012 = vmatpush1.msra.mxu0 0.0
          %1013 = vmatprep.subr.mxu0 0.0
          %1014 = vmatpush1.msra.mxu0 0.0
          %1015 = vmatprep.subr.mxu0 0.0
          %1016 = vmatpush1.msra.mxu0 0.0
          %1017 = vmatprep.subr.mxu0 0.0
          %1018 = vmatpush1.msra.mxu0 0.0
          %1019 = vmatprep.subr.mxu0 0.0
          %1020 = vmatpush1.msra.mxu0 0.0
          %1021 = vmatprep.subr.mxu0 0.0
          %1022 = vmatpush1.msra.mxu0 0.0
          %1023 = vmatprep.subr.mxu0 0.0
          %1024 = vmatpush1.msra.mxu0 0.0
          %1025 = vmatprep.subr.mxu0 0.0
          %1026 = vmatpush1.msra.mxu0 0.0
          %1027 = vmatprep.subr.mxu0 0.0
          %1028 = vmatpush1.msra.mxu0 %v994
          %1029 = vmatprep.subr.mxu0 0.0
          %1030 = vmatpush1.msra.mxu0 %v993
          %1031 = vmatprep.subr.mxu0 0.0
          %1032 = vmatpush1.msra.mxu0 %v992
          %1033 = vmatprep.subr.mxu0 0.0
          %1034 = vmatpush1.msra.mxu0 %v991
          %1035 = vmatprep.subr.mxu0 0.0
          %1036 = vmatpush2.msra.mxu0 0.0
          %1037 = vmatprep.subr.mxu0 0.0
          %1038 = vmatpush2.msra.mxu0 0.0
          %1039 = vmatprep.subr.mxu0 0.0
          %1040 = vmatpush2.msra.mxu0 0.0
          %1041 = vmatprep.subr.mxu0 0.0
          %1042 = vmatpush2.msra.mxu0 0.0
          %1043 = vmatprep.subr.mxu0 0.0
          %1044 = vmatpush2.msra.mxu0 0.0
          %1045 = vmatprep.subr.mxu0 0.0
          %1046 = vmatpush2.msra.mxu0 0.0
          %1047 = vmatprep.subr.mxu0 0.0
          %1048 = vmatpush2.msra.mxu0 0.0
          %1049 = vmatprep.subr.mxu0 0.0
          %1050 = vmatpush2.msra.mxu0 0.0
          %1051 = vmatprep.subr.mxu0 0.0
          %1052 = vmatpush2.msra.mxu0 0.0
          %1053 = vmatprep.subr.mxu0 0.0
          %1054 = vmatpush2.msra.mxu0 0.0
          %1055 = vmatprep.subr.mxu0 0.0
          %1056 = vmatpush2.msra.mxu0 0.0
          %1057 = vmatprep.subr.mxu0 0.0
          %1058 = vmatpush2.msra.mxu0 0.0
          %1059 = vmatprep.subr.mxu0 0.0
          %1060 = vmatpush2.msra.mxu0 0.0
          %1061 = vmatprep.subr.mxu0 0.0
          %1062 = vmatpush2.msra.mxu0 0.0
          %1063 = vmatprep.subr.mxu0 0.0
          %1064 = vmatpush2.msra.mxu0 0.0
          %1065 = vmatprep.subr.mxu0 0.0
          %1066 = vmatpush2.msra.mxu0 0.0
          %1067 = vmatprep.mubr.f32.mxu0 0.0
          %1068 = vmatmul.mubr.f32.gmra.mxu0 %v894
          %v1069 = vpop.f32.mrf.mxu0
          %v1070 = vadd.f32 %v1001, %v1069
          %v1071 = vpop.f32.mrf.mxu0
          %1072 = vmatprep.mubr.f32.mxu0 0.0
          %1073 = vmatmul.mubr.f32.gmra.mxu0 %v897
          %v1074 = vpop.f32.mrf.mxu0
          %v1075 = vadd.f32 %v1001, %v1074
          %v1076 = vpop.f32.mrf.mxu0
          %1077 = vmatprep.mubr.f32.mxu0 0.0
          %1078 = vmatmul.mubr.f32.gmra.mxu0 %v900
          %v1079 = vpop.f32.mrf.mxu0
          %v1080 = vadd.f32 %v1001, %v1079
          %v1081 = vpop.f32.mrf.mxu0
          %1082 = vmatprep.mubr.f32.mxu0 0.0
          %1083 = vmatmul.mubr.f32.gmra.mxu0 %v903
          %v1084 = vpop.f32.mrf.mxu0
          %v1085 = vadd.f32 %v1001, %v1084
          %v1086 = vpop.f32.mrf.mxu0
          %1087 = vdwg.mxu0
          %s1088 = scalar_lea.vmem [#allocation11], 64
          %v1089 = vld [vmem:[%s1088] sm:$0xff]
          %v1090 = vld [vmem:[%s1088 + $0x8] sm:$0xff]
          %v1091 = vld [vmem:[%s1088 + $0x10] sm:$0xff]
          %v1092 = vld [vmem:[%s1088 + $0x18] sm:$0xff]
          %s1093 = scalar_lea.vmem %s6, 2
          %v1094 = vld [vmem:[%s1093] sm:$0x1]
          %v1096 = vlaneseq
          %v1097 = vshrl.u32 %v1096, 7
          %v1098 = vsub.s32 0, %v1097
          %v1099 = vrot.slane %v1094, %v1098
          %1101 = vmatprep.subr.mxu0 0.0
          %1102 = vmatpush1.msra.mxu0 0.0
          %1103 = vmatprep.subr.mxu0 0.0
          %1104 = vmatpush1.msra.mxu0 0.0
          %1105 = vmatprep.subr.mxu0 0.0
          %1106 = vmatpush1.msra.mxu0 0.0
          %1107 = vmatprep.subr.mxu0 0.0
          %1108 = vmatpush1.msra.mxu0 0.0
          %1109 = vmatprep.subr.mxu0 0.0
          %1110 = vmatpush1.msra.mxu0 0.0
          %1111 = vmatprep.subr.mxu0 0.0
          %1112 = vmatpush1.msra.mxu0 0.0
          %1113 = vmatprep.subr.mxu0 0.0
          %1114 = vmatpush1.msra.mxu0 0.0
          %1115 = vmatprep.subr.mxu0 0.0
          %1116 = vmatpush1.msra.mxu0 0.0
          %1117 = vmatprep.subr.mxu0 0.0
          %1118 = vmatpush1.msra.mxu0 0.0
          %1119 = vmatprep.subr.mxu0 0.0
          %1120 = vmatpush1.msra.mxu0 0.0
          %1121 = vmatprep.subr.mxu0 0.0
          %1122 = vmatpush1.msra.mxu0 0.0
          %1123 = vmatprep.subr.mxu0 0.0
          %1124 = vmatpush1.msra.mxu0 0.0
          %1125 = vmatprep.subr.mxu0 0.0
          %1126 = vmatpush1.msra.mxu0 %v1092
          %1127 = vmatprep.subr.mxu0 0.0
          %1128 = vmatpush1.msra.mxu0 %v1091
          %1129 = vmatprep.subr.mxu0 0.0
          %1130 = vmatpush1.msra.mxu0 %v1090
          %1131 = vmatprep.subr.mxu0 0.0
          %1132 = vmatpush1.msra.mxu0 %v1089
          %1133 = vmatprep.subr.mxu0 0.0
          %1134 = vmatpush2.msra.mxu0 0.0
          %1135 = vmatprep.subr.mxu0 0.0
          %1136 = vmatpush2.msra.mxu0 0.0
          %1137 = vmatprep.subr.mxu0 0.0
          %1138 = vmatpush2.msra.mxu0 0.0
          %1139 = vmatprep.subr.mxu0 0.0
          %1140 = vmatpush2.msra.mxu0 0.0
          %1141 = vmatprep.subr.mxu0 0.0
          %1142 = vmatpush2.msra.mxu0 0.0
          %1143 = vmatprep.subr.mxu0 0.0
          %1144 = vmatpush2.msra.mxu0 0.0
          %1145 = vmatprep.subr.mxu0 0.0
          %1146 = vmatpush2.msra.mxu0 0.0
          %1147 = vmatprep.subr.mxu0 0.0
          %1148 = vmatpush2.msra.mxu0 0.0
          %1149 = vmatprep.subr.mxu0 0.0
          %1150 = vmatpush2.msra.mxu0 0.0
          %1151 = vmatprep.subr.mxu0 0.0
          %1152 = vmatpush2.msra.mxu0 0.0
          %1153 = vmatprep.subr.mxu0 0.0
          %1154 = vmatpush2.msra.mxu0 0.0
          %1155 = vmatprep.subr.mxu0 0.0
          %1156 = vmatpush2.msra.mxu0 0.0
          %1157 = vmatprep.subr.mxu0 0.0
          %1158 = vmatpush2.msra.mxu0 0.0
          %1159 = vmatprep.subr.mxu0 0.0
          %1160 = vmatpush2.msra.mxu0 0.0
          %1161 = vmatprep.subr.mxu0 0.0
          %1162 = vmatpush2.msra.mxu0 0.0
          %1163 = vmatprep.subr.mxu0 0.0
          %1164 = vmatpush2.msra.mxu0 0.0
          %1165 = vmatprep.mubr.f32.mxu0 0.0
          %1166 = vmatmul.mubr.f32.gmra.mxu0 %v894
          %v1167 = vpop.f32.mrf.mxu0
          %v1168 = vadd.f32 %v1099, %v1167
          %v1169 = vpop.f32.mrf.mxu0
          %1170 = vmatprep.mubr.f32.mxu0 0.0
          %1171 = vmatmul.mubr.f32.gmra.mxu0 %v897
          %v1172 = vpop.f32.mrf.mxu0
          %v1173 = vadd.f32 %v1099, %v1172
          %v1174 = vpop.f32.mrf.mxu0
          %1175 = vmatprep.mubr.f32.mxu0 0.0
          %1176 = vmatmul.mubr.f32.gmra.mxu0 %v900
          %v1177 = vpop.f32.mrf.mxu0
          %v1178 = vadd.f32 %v1099, %v1177
          %v1179 = vpop.f32.mrf.mxu0
          %1180 = vmatprep.mubr.f32.mxu0 0.0
          %1181 = vmatmul.mubr.f32.gmra.mxu0 %v903
          %v1182 = vpop.f32.mrf.mxu0
          %v1183 = vadd.f32 %v1099, %v1182
          %v1184 = vpop.f32.mrf.mxu0
          %1185 = vdwg.mxu0
          %v1186 = vld [vmem:[#allocation12] sm:$0xff]
          %v1187 = vld [vmem:[#allocation12 + $0x8] sm:$0xff]
          %v1188 = vld [vmem:[#allocation12 + $0x10] sm:$0xff]
          %v1189 = vld [vmem:[#allocation12 + $0x18] sm:$0xff]
          %v1190 = vld [vmem:[%s7] sm:$0x1]
          %v1192 = vlaneseq
          %v1193 = vshrl.u32 %v1192, 7
          %v1194 = vsub.s32 0, %v1193
          %v1195 = vrot.slane %v1190, %v1194
          %v1198 = vsel %vm606, %v877, 0
          %1200 = vmatprep.subr.mxu0 0.0
          %1201 = vmatpush1.msra.mxu0 0.0
          %1202 = vmatprep.subr.mxu0 0.0
          %1203 = vmatpush1.msra.mxu0 0.0
          %1204 = vmatprep.subr.mxu0 0.0
          %1205 = vmatpush1.msra.mxu0 0.0
          %1206 = vmatprep.subr.mxu0 0.0
          %1207 = vmatpush1.msra.mxu0 0.0
          %1208 = vmatprep.subr.mxu0 0.0
          %1209 = vmatpush1.msra.mxu0 0.0
          %1210 = vmatprep.subr.mxu0 0.0
          %1211 = vmatpush1.msra.mxu0 0.0
          %1212 = vmatprep.subr.mxu0 0.0
          %1213 = vmatpush1.msra.mxu0 0.0
          %1214 = vmatprep.subr.mxu0 0.0
          %1215 = vmatpush1.msra.mxu0 0.0
          %1216 = vmatprep.subr.mxu0 0.0
          %1217 = vmatpush1.msra.mxu0 0.0
          %1218 = vmatprep.subr.mxu0 0.0
          %1219 = vmatpush1.msra.mxu0 0.0
          %1220 = vmatprep.subr.mxu0 0.0
          %1221 = vmatpush1.msra.mxu0 0.0
          %1222 = vmatprep.subr.mxu0 0.0
          %1223 = vmatpush1.msra.mxu0 0.0
          %1224 = vmatprep.subr.mxu0 0.0
          %1225 = vmatpush1.msra.mxu0 %v1189
          %1226 = vmatprep.subr.mxu0 0.0
          %1227 = vmatpush1.msra.mxu0 %v1188
          %1228 = vmatprep.subr.mxu0 0.0
          %1229 = vmatpush1.msra.mxu0 %v1187
          %1230 = vmatprep.subr.mxu0 0.0
          %1231 = vmatpush1.msra.mxu0 %v1186
          %1232 = vmatprep.subr.mxu0 0.0
          %1233 = vmatpush2.msra.mxu0 0.0
          %1234 = vmatprep.subr.mxu0 0.0
          %1235 = vmatpush2.msra.mxu0 0.0
          %1236 = vmatprep.subr.mxu0 0.0
          %1237 = vmatpush2.msra.mxu0 0.0
          %1238 = vmatprep.subr.mxu0 0.0
          %1239 = vmatpush2.msra.mxu0 0.0
          %1240 = vmatprep.subr.mxu0 0.0
          %1241 = vmatpush2.msra.mxu0 0.0
          %1242 = vmatprep.subr.mxu0 0.0
          %1243 = vmatpush2.msra.mxu0 0.0
          %1244 = vmatprep.subr.mxu0 0.0
          %1245 = vmatpush2.msra.mxu0 0.0
          %1246 = vmatprep.subr.mxu0 0.0
          %1247 = vmatpush2.msra.mxu0 0.0
          %1248 = vmatprep.subr.mxu0 0.0
          %1249 = vmatpush2.msra.mxu0 0.0
          %1250 = vmatprep.subr.mxu0 0.0
          %1251 = vmatpush2.msra.mxu0 0.0
          %1252 = vmatprep.subr.mxu0 0.0
          %1253 = vmatpush2.msra.mxu0 0.0
          %1254 = vmatprep.subr.mxu0 0.0
          %1255 = vmatpush2.msra.mxu0 0.0
          %1256 = vmatprep.subr.mxu0 0.0
          %1257 = vmatpush2.msra.mxu0 0.0
          %1258 = vmatprep.subr.mxu0 0.0
          %1259 = vmatpush2.msra.mxu0 0.0
          %1260 = vmatprep.subr.mxu0 0.0
          %1261 = vmatpush2.msra.mxu0 0.0
          %1262 = vmatprep.subr.mxu0 0.0
          %1263 = vmatpush2.msra.mxu0 0.0
          %1264 = vmatprep.mubr.f32.mxu0 0.0
          %1265 = vmatmul.mubr.f32.gmra.mxu0 %v1198
          %v1266 = vpop.f32.mrf.mxu0
          %v1267 = vadd.f32 %v1195, %v1266
          %v1268 = vpop.f32.mrf.mxu0
          %1269 = vdwg.mxu0
          %s1270 = scalar_lea.vmem [#allocation12], 32
          %v1271 = vld [vmem:[%s1270] sm:$0xff]
          %v1272 = vld [vmem:[%s1270 + $0x8] sm:$0xff]
          %v1273 = vld [vmem:[%s1270 + $0x10] sm:$0xff]
          %v1274 = vld [vmem:[%s1270 + $0x18] sm:$0xff]
          %s1275 = scalar_lea.vmem %s7, 1
          %v1276 = vld [vmem:[%s1275] sm:$0x1]
          %v1278 = vlaneseq
          %v1279 = vshrl.u32 %v1278, 7
          %v1280 = vsub.s32 0, %v1279
          %v1281 = vrot.slane %v1276, %v1280
          %1283 = vmatprep.subr.mxu0 0.0
          %1284 = vmatpush1.msra.mxu0 0.0
          %1285 = vmatprep.subr.mxu0 0.0
          %1286 = vmatpush1.msra.mxu0 0.0
          %1287 = vmatprep.subr.mxu0 0.0
          %1288 = vmatpush1.msra.mxu0 0.0
          %1289 = vmatprep.subr.mxu0 0.0
          %1290 = vmatpush1.msra.mxu0 0.0
          %1291 = vmatprep.subr.mxu0 0.0
          %1292 = vmatpush1.msra.mxu0 0.0
          %1293 = vmatprep.subr.mxu0 0.0
          %1294 = vmatpush1.msra.mxu0 0.0
          %1295 = vmatprep.subr.mxu0 0.0
          %1296 = vmatpush1.msra.mxu0 0.0
          %1297 = vmatprep.subr.mxu0 0.0
          %1298 = vmatpush1.msra.mxu0 0.0
          %1299 = vmatprep.subr.mxu0 0.0
          %1300 = vmatpush1.msra.mxu0 0.0
          %1301 = vmatprep.subr.mxu0 0.0
          %1302 = vmatpush1.msra.mxu0 0.0
          %1303 = vmatprep.subr.mxu0 0.0
          %1304 = vmatpush1.msra.mxu0 0.0
          %1305 = vmatprep.subr.mxu0 0.0
          %1306 = vmatpush1.msra.mxu0 0.0
          %1307 = vmatprep.subr.mxu0 0.0
          %1308 = vmatpush1.msra.mxu0 %v1274
          %1309 = vmatprep.subr.mxu0 0.0
          %1310 = vmatpush1.msra.mxu0 %v1273
          %1311 = vmatprep.subr.mxu0 0.0
          %1312 = vmatpush1.msra.mxu0 %v1272
          %1313 = vmatprep.subr.mxu0 0.0
          %1314 = vmatpush1.msra.mxu0 %v1271
          %1315 = vmatprep.subr.mxu0 0.0
          %1316 = vmatpush2.msra.mxu0 0.0
          %1317 = vmatprep.subr.mxu0 0.0
          %1318 = vmatpush2.msra.mxu0 0.0
          %1319 = vmatprep.subr.mxu0 0.0
          %1320 = vmatpush2.msra.mxu0 0.0
          %1321 = vmatprep.subr.mxu0 0.0
          %1322 = vmatpush2.msra.mxu0 0.0
          %1323 = vmatprep.subr.mxu0 0.0
          %1324 = vmatpush2.msra.mxu0 0.0
          %1325 = vmatprep.subr.mxu0 0.0
          %1326 = vmatpush2.msra.mxu0 0.0
          %1327 = vmatprep.subr.mxu0 0.0
          %1328 = vmatpush2.msra.mxu0 0.0
          %1329 = vmatprep.subr.mxu0 0.0
          %1330 = vmatpush2.msra.mxu0 0.0
          %1331 = vmatprep.subr.mxu0 0.0
          %1332 = vmatpush2.msra.mxu0 0.0
          %1333 = vmatprep.subr.mxu0 0.0
          %1334 = vmatpush2.msra.mxu0 0.0
          %1335 = vmatprep.subr.mxu0 0.0
          %1336 = vmatpush2.msra.mxu0 0.0
          %1337 = vmatprep.subr.mxu0 0.0
          %1338 = vmatpush2.msra.mxu0 0.0
          %1339 = vmatprep.subr.mxu0 0.0
          %1340 = vmatpush2.msra.mxu0 0.0
          %1341 = vmatprep.subr.mxu0 0.0
          %1342 = vmatpush2.msra.mxu0 0.0
          %1343 = vmatprep.subr.mxu0 0.0
          %1344 = vmatpush2.msra.mxu0 0.0
          %1345 = vmatprep.subr.mxu0 0.0
          %1346 = vmatpush2.msra.mxu0 0.0
          %1347 = vmatprep.mubr.f32.mxu0 0.0
          %1348 = vmatmul.mubr.f32.gmra.mxu0 %v1198
          %v1349 = vpop.f32.mrf.mxu0
          %v1350 = vadd.f32 %v1281, %v1349
          %v1351 = vpop.f32.mrf.mxu0
          %1352 = vdwg.mxu0
          %s1353 = scalar_lea.vmem [#allocation12], 64
          %v1354 = vld [vmem:[%s1353] sm:$0xff]
          %v1355 = vld [vmem:[%s1353 + $0x8] sm:$0xff]
          %v1356 = vld [vmem:[%s1353 + $0x10] sm:$0xff]
          %v1357 = vld [vmem:[%s1353 + $0x18] sm:$0xff]
          %s1358 = scalar_lea.vmem %s7, 2
          %v1359 = vld [vmem:[%s1358] sm:$0x1]
          %v1361 = vlaneseq
          %v1362 = vshrl.u32 %v1361, 7
          %v1363 = vsub.s32 0, %v1362
          %v1364 = vrot.slane %v1359, %v1363
          %1366 = vmatprep.subr.mxu0 0.0
          %1367 = vmatpush1.msra.mxu0 0.0
          %1368 = vmatprep.subr.mxu0 0.0
          %1369 = vmatpush1.msra.mxu0 0.0
          %1370 = vmatprep.subr.mxu0 0.0
          %1371 = vmatpush1.msra.mxu0 0.0
          %1372 = vmatprep.subr.mxu0 0.0
          %1373 = vmatpush1.msra.mxu0 0.0
          %1374 = vmatprep.subr.mxu0 0.0
          %1375 = vmatpush1.msra.mxu0 0.0
          %1376 = vmatprep.subr.mxu0 0.0
          %1377 = vmatpush1.msra.mxu0 0.0
          %1378 = vmatprep.subr.mxu0 0.0
          %1379 = vmatpush1.msra.mxu0 0.0
          %1380 = vmatprep.subr.mxu0 0.0
          %1381 = vmatpush1.msra.mxu0 0.0
          %1382 = vmatprep.subr.mxu0 0.0
          %1383 = vmatpush1.msra.mxu0 0.0
          %1384 = vmatprep.subr.mxu0 0.0
          %1385 = vmatpush1.msra.mxu0 0.0
          %1386 = vmatprep.subr.mxu0 0.0
          %1387 = vmatpush1.msra.mxu0 0.0
          %1388 = vmatprep.subr.mxu0 0.0
          %1389 = vmatpush1.msra.mxu0 0.0
          %1390 = vmatprep.subr.mxu0 0.0
          %1391 = vmatpush1.msra.mxu0 %v1357
          %1392 = vmatprep.subr.mxu0 0.0
          %1393 = vmatpush1.msra.mxu0 %v1356
          %1394 = vmatprep.subr.mxu0 0.0
          %1395 = vmatpush1.msra.mxu0 %v1355
          %1396 = vmatprep.subr.mxu0 0.0
          %1397 = vmatpush1.msra.mxu0 %v1354
          %1398 = vmatprep.subr.mxu0 0.0
          %1399 = vmatpush2.msra.mxu0 0.0
          %1400 = vmatprep.subr.mxu0 0.0
          %1401 = vmatpush2.msra.mxu0 0.0
          %1402 = vmatprep.subr.mxu0 0.0
          %1403 = vmatpush2.msra.mxu0 0.0
          %1404 = vmatprep.subr.mxu0 0.0
          %1405 = vmatpush2.msra.mxu0 0.0
          %1406 = vmatprep.subr.mxu0 0.0
          %1407 = vmatpush2.msra.mxu0 0.0
          %1408 = vmatprep.subr.mxu0 0.0
          %1409 = vmatpush2.msra.mxu0 0.0
          %1410 = vmatprep.subr.mxu0 0.0
          %1411 = vmatpush2.msra.mxu0 0.0
          %1412 = vmatprep.subr.mxu0 0.0
          %1413 = vmatpush2.msra.mxu0 0.0
          %1414 = vmatprep.subr.mxu0 0.0
          %1415 = vmatpush2.msra.mxu0 0.0
          %1416 = vmatprep.subr.mxu0 0.0
          %1417 = vmatpush2.msra.mxu0 0.0
          %1418 = vmatprep.subr.mxu0 0.0
          %1419 = vmatpush2.msra.mxu0 0.0
          %1420 = vmatprep.subr.mxu0 0.0
          %1421 = vmatpush2.msra.mxu0 0.0
          %1422 = vmatprep.subr.mxu0 0.0
          %1423 = vmatpush2.msra.mxu0 0.0
          %1424 = vmatprep.subr.mxu0 0.0
          %1425 = vmatpush2.msra.mxu0 0.0
          %1426 = vmatprep.subr.mxu0 0.0
          %1427 = vmatpush2.msra.mxu0 0.0
          %1428 = vmatprep.subr.mxu0 0.0
          %1429 = vmatpush2.msra.mxu0 0.0
          %1430 = vmatprep.mubr.f32.mxu0 0.0
          %1431 = vmatmul.mubr.f32.gmra.mxu0 %v1198
          %v1432 = vpop.f32.mrf.mxu0
          %v1433 = vadd.f32 %v1364, %v1432
          %v1434 = vpop.f32.mrf.mxu0
          %1435 = vdwg.mxu0
          %v1436 = vadd.f32 %v972, %v1267
          %v1437 = vadd.f32 %v977, %v1267
          %v1438 = vadd.f32 %v982, %v1267
          %v1439 = vadd.f32 %v987, %v1267
          %v1440 = vxor.u32 %v1436, 2147483648
          %v1441 = vxor.u32 %v1437, 2147483648
          %v1442 = vxor.u32 %v1438, 2147483648
          %v1443 = vxor.u32 %v1439, 2147483648
          %v1444 = vmul.f32 %v1440, 1.442695
          %v1445 = vpow.pop %v1444
          %v1446 = vmul.f32 %v1441, 1.442695
          %v1447 = vpow.pop %v1446
          %v1448 = vmul.f32 %v1442, 1.442695
          %v1449 = vpow.pop %v1448
          %v1450 = vmul.f32 %v1443, 1.442695
          %v1451 = vpow.pop %v1450
          %v1452 = vadd.f32 %v1445, 1.0
          %v1453 = vadd.f32 %v1447, 1.0
          %v1454 = vadd.f32 %v1449, 1.0
          %v1455 = vadd.f32 %v1451, 1.0
          %v1456 = vrcp.pop %v1452
          %v1457 = vmul.f32 1.0, %v1456
          %v1458 = vrcp.pop %v1453
          %v1459 = vmul.f32 1.0, %v1458
          %v1460 = vrcp.pop %v1454
          %v1461 = vmul.f32 1.0, %v1460
          %v1462 = vrcp.pop %v1455
          %v1463 = vmul.f32 1.0, %v1462
          %v1464 = vadd.f32 %v1070, %v1350
          %v1465 = vadd.f32 %v1075, %v1350
          %v1466 = vadd.f32 %v1080, %v1350
          %v1467 = vadd.f32 %v1085, %v1350
          %v1468 = vxor.u32 %v1464, 2147483648
          %v1469 = vxor.u32 %v1465, 2147483648
          %v1470 = vxor.u32 %v1466, 2147483648
          %v1471 = vxor.u32 %v1467, 2147483648
          %v1472 = vmul.f32 %v1468, 1.442695
          %v1473 = vpow.pop %v1472
          %v1474 = vmul.f32 %v1469, 1.442695
          %v1475 = vpow.pop %v1474
          %v1476 = vmul.f32 %v1470, 1.442695
          %v1477 = vpow.pop %v1476
          %v1478 = vmul.f32 %v1471, 1.442695
          %v1479 = vpow.pop %v1478
          %v1480 = vadd.f32 %v1473, 1.0
          %v1481 = vadd.f32 %v1475, 1.0
          %v1482 = vadd.f32 %v1477, 1.0
          %v1483 = vadd.f32 %v1479, 1.0
          %v1484 = vrcp.pop %v1480
          %v1485 = vmul.f32 1.0, %v1484
          %v1486 = vrcp.pop %v1481
          %v1487 = vmul.f32 1.0, %v1486
          %v1488 = vrcp.pop %v1482
          %v1489 = vmul.f32 1.0, %v1488
          %v1490 = vrcp.pop %v1483
          %v1491 = vmul.f32 1.0, %v1490
          %v1492 = vmul.f32 %v1457, %v1433
          %v1493 = vmul.f32 %v1459, %v1433
          %v1494 = vmul.f32 %v1461, %v1433
          %v1495 = vmul.f32 %v1463, %v1433
          %v1496 = vadd.f32 %v1168, %v1492
          %v1497 = vadd.f32 %v1173, %v1493
          %v1498 = vadd.f32 %v1178, %v1494
          %v1499 = vadd.f32 %v1183, %v1495
          %v1500 = vtanh.pop %v1496
          %v1501 = vtanh.pop %v1497
          %v1502 = vtanh.pop %v1498
          %v1503 = vtanh.pop %v1499
          %v1504 = vsub.f32 1.0, %v1485
          %v1505 = vsub.f32 1.0, %v1487
          %v1506 = vsub.f32 1.0, %v1489
          %v1507 = vsub.f32 1.0, %v1491
          %v1508 = vmul.f32 %v1504, %v1500
          %v1509 = vmul.f32 %v1505, %v1501
          %v1510 = vmul.f32 %v1506, %v1502
          %v1511 = vmul.f32 %v1507, %v1503
          %v1512 = vmul.f32 %v1485, %v877
          %v1513 = vmul.f32 %v1487, %v877
          %v1514 = vmul.f32 %v1489, %v877
          %v1515 = vmul.f32 %v1491, %v877
          %v1516 = vadd.f32 %v1508, %v1512
          %v1517 = vadd.f32 %v1509, %v1513
          %v1518 = vadd.f32 %v1510, %v1514
          %v1519 = vadd.f32 %v1511, %v1515
          %v1520 = vsel %vm606, %v1516, 0.0
          %v1521 = vsel %vm606, %v1517, 0.0
          %v1522 = vadd.f32 %v1520, %v1521
          %v1523 = vsel %vm606, %v1518, 0.0
          %v1524 = vadd.f32 %v1522, %v1523
          %v1525 = vsel %vm606, %v1519, 0.0
          %v1526 = vadd.f32 %v1524, %v1525
          %1527 = vst.msk [vmem:[%s506] sm:$0xff] %vm606, %v1526
        $region84: #{tpu_custom_call.1} parent=51 // pred_fallthru
          _
        %s1528 = sand.u32 %s263, 1
        %s1529 = scalar_lea.sflag [#allocation5], %s1528
        %s1530 = sand.u32 %s263, 1
        %s1531 = smul.addr %s1530, 8
        %s1532 = scalar_lea.vmem [#allocation14], %s1531
        // Predicated region
        $region85: #{tpu_custom_call.1} parent=51 // pred_check
          %p1533 = pneg %p273
        $region86: #{tpu_custom_call.1} parent=51 // pred_check_branch
          %1535 = sbr.rel (%p1533) target = $region88
        $region87: #{tpu_custom_call.1} parent=51 // pred_region
          %s1537 = ssub.s32 128, 128
          %1538 = vsyncadd %s1529, %s1537
          %s1539 = sadd.s32 %s38, %s37
          %s1540 = smul.addr %s1539, 128
          %s1541 = scalar_lea.hbm %s8, %s1540
          %s1543 = sshll.u32 %s1532, 4
          %s1544 = int_to_ptr.vmem [resolvable:$true] %s1543
          %1546 = dma.vmem_to_hbm [thread:$0]  %s1544, 128, %s1541, %s1529
        $region88: #{tpu_custom_call.1} parent=51 // pred_fallthru
          _
      $region52: #{tpu_custom_call.1} parent=5 // pred_fallthru
        _
      %p1547 = scmp.le.s32.totalorder 2, %s27
      // Predicated region
      $region89: #{tpu_custom_call.1} parent=5 // pred_check
        %p1548 = pneg %p1547
      $region90: #{tpu_custom_call.1} parent=5 // pred_check_branch
        %1550 = sbr.rel (%p1548) target = $region92
      $region91: #{tpu_custom_call.1} parent=5 // pred_region
        %s1551 = ssub.s32 %s27, 2
        // Predicated region
        $region93: #{tpu_custom_call.1} parent=91 // pred_check
          %p1552 = pneg %p279
        $region94: #{tpu_custom_call.1} parent=91 // pred_check_branch
          %1554 = sbr.rel (%p1552) target = $region96
        $region95: #{tpu_custom_call.1} parent=91 // pred_region
          %s1555 = sand.u32 %s264, 1
          %s1556 = scalar_lea.sflag [#allocation5], %s1555
          %s1557 = sand.u32 %s264, 1
          %s1558 = smul.addr %s1557, 8
          %s1559 = scalar_lea.vmem [#allocation14], %s1558
          %1560 = dma.done %s1556, 128
        $region96: #{tpu_custom_call.1} parent=91 // pred_fallthru
          _
      $region92: #{tpu_custom_call.1} parent=5 // pred_fallthru
        _
    $region6: #{tpu_custom_call.1} parent=1 // loop_footer
      %s31 = sadd.s32 1, %s27
    $region7: #{tpu_custom_call.1} parent=1 // loop_footer_branch
      %26 = sbr.rel target = $region3
    $region8: #{tpu_custom_call.1} parent=1 // loop_exit
      _
    %1561 = vsyncpa [#allocation4], 1
    %s1562 = scalar_lea.sflag [#allocation4], 1
    %1563 = vsyncpa %s1562, 1
    %1564 = vsyncpa [#allocation7], 1
    %s1565 = scalar_lea.sflag [#allocation7], 1
    %1566 = vsyncpa %s1565, 1
    %1567 = vsyncpa [#allocation10], 1
    %s1568 = scalar_lea.sflag [#allocation10], 1
    %1569 = vsyncpa %s1568, 1
    %1570 = vsyncpa [#allocation13], 1
    %1571 = vsyncpa [#allocation5], 1
    %s1572 = scalar_lea.sflag [#allocation5], 1
    %1573 = vsyncpa %s1572, 1

</llo_original>
